<compile_context>
chip_gen: v6e
topology: v6e:2x2x1
jax: 0.10.0
libtpu: 0.0.40
codegen_flags: <defaults>
</compile_context>

<pallas_src>
import math
import functools

import jax
import jax.numpy as jnp
import numpy as np
from jax.experimental import pallas as pl
from jax.experimental.pallas import tpu as pltpu


def _rup(v, m):
    return (v + m - 1) // m * m


def _vmem_budget_bytes():
    """(usable-bytes target, vmem_limit cap) for the local TPU generation."""
    kind = ""
    try:
        kind = jax.devices()[0].device_kind.lower()
    except Exception:
        pass
    if "v7" in kind:
        # v7x: 64 MiB physical VMEM per TensorCore -> leave compiler headroom.
        return 36 << 20, 48 << 20
    if "v5" in kind or "v6" in kind:
        # v5e / v6e: 128 MiB physical VMEM -> allow larger blocks.
        return 88 << 20, 100 << 20
    # Unknown / older generation: stay conservative.
    return 36 << 20, 48 << 20


# ---------------------------------------------------------------------------
# Kernel: cls-query multi-head attention pool over a block of `bb` batch rows.
# ---------------------------------------------------------------------------
def _attn_pool_kernel(num_heads, head_dim, hpad, compute_dtype,
                      x_ref, wkv_ref, posT_ref, scls_ref, wext_ref, bcomb_ref,
                      pooled_ref, att_ref):
    bb, _, L = x_ref.shape
    F = wkv_ref.shape[0]                    # hpad + D  (score rows | value rows)
    H, hd = num_heads, head_dim
    D = F - hpad

    wkv = wkv_ref[...]                      # [F, C]  (bf16), loaded once

    # Fused (head-folded key-score | value) projection: one 2-D MXU matmul per
    # batch row; the [F, C] weight is shared (never replicated per row), and
    # each f32 x row is cast to bf16 in-register right before the MXU.
    kv = jnp.stack(
        [jnp.dot(wkv, x_ref[b].astype(compute_dtype),
                 preferred_element_type=jnp.float32)
         for b in range(bb)],
        axis=0)                                                   # [bb, F, L]
    kv = kv + posT_ref[...][None]           # + positional / bias terms

    scores = kv[:, :H, :]                   # [bb, H, L]
    vT = kv[:, hpad:, :]                    # [bb, D, L]

    # Softmax over the full sequence (L projected keys + the cls key); the
    # cls key contributes one precomputed scalar per head.
    s_cls = scls_ref[...][None]             # [1, H, 1]
    m = jnp.maximum(jnp.max(scores, axis=-1, keepdims=True), s_cls)
    p = jnp.exp(scores - m)                 # [bb, H, L]
    p_cls = jnp.exp(s_cls - m)              # [bb, H, 1]
    inv = pl.reciprocal(jnp.sum(p, axis=-1, keepdims=True) + p_cls,
                        approx=True)        # EUP slot; ~1e-3 relative error
    p = p * inv
    p_cls = p_cls * inv

    # Attention-map output: head-mean of the non-cls probabilities,
    # zero-padded to a lane-dense (128-multiple) store.
    att = jnp.mean(p, axis=1)                                     # [bb, L]
    Lp = att_ref.shape[-1]
    if Lp > L:
        att = jnp.concatenate(
            [att, jnp.zeros((bb, Lp - L), att.dtype)], axis=-1)
    att_ref[...] = att

    # Weighted value sum.  Heads are expanded to value dims with a pure
    # broadcast (VPU) instead of a tiny-K matmul.
    p_full = jnp.broadcast_to(p[:, :, None, :],
                              (bb, H, hd, L)).reshape(bb, D, L)
    o = jnp.sum(p_full * vT, axis=-1)                             # [bb, D]

    # Fused out_proj . c_proj epilogue (bf16 inputs, f32 accumulate).  The cls
    # value contribution is folded into the same matmul: the per-head cls
    # probabilities become H extra K columns, matching the H extra rows of
    # wext (cls value row pre-multiplied into the combined weight).
    o_ext = jnp.concatenate([o, p_cls[:, :, 0]], axis=-1)         # [bb, D+H]
    pooled_ref[...] = (
        jnp.dot(o_ext.astype(compute_dtype), wext_ref[...],
                preferred_element_type=jnp.float32)
        + bcomb_ref[...])


# ---------------------------------------------------------------------------
# Wrapper: parameter-only precompute (weight prep) + pallas_call.
# ---------------------------------------------------------------------------
def attention_pool2d_forward(x, params, num_heads, *, block_b=None,
                             use_bf16=True):
    B, C, L = x.shape
    D = C                                   # embed_dim
    H = num_heads
    assert D % H == 0
    hd = D // H
    HP = 8                                  # sublane-aligned score-row padding
    F = HP + D
    f32 = jnp.float32
    cdt = jnp.bfloat16 if use_bf16 else f32

    pos = params['pos_emb'][0].astype(f32)          # [L+1, D]
    cls = params['cls_token'][0].astype(f32)        # [1, D]
    in_w = params['in_proj_w'].astype(f32)          # [3D, D]
    in_b = params['in_proj_b'].astype(f32)          # [3D]
    wq, wk, wv = in_w[:D], in_w[D:2 * D], in_w[2 * D:]
    bq, bk, bv = in_b[:D], in_b[D:2 * D], in_b[2 * D:]
    wo, bo = params['out_proj_w'].astype(f32), params['out_proj_b'].astype(f32)
    wc, bc = params['c_proj_w'].astype(f32), params['c_proj_b'].astype(f32)
    Do = wc.shape[0]

    # ---- parameter-only precompute (independent of x) -----------------------
    # query row = cls_token + pos[0] (cls_tokens) + pos[0] (x += pos)
    cls_row = cls + 2.0 * pos[0:1, :]                               # [1, D]
    q = cls_row @ wq.T + bq[None, :]                                # [1, D]
    scale = 1.0 / math.sqrt(hd)
    head_of = jnp.arange(D) // hd
    mask = (head_of[:, None] == jnp.arange(H)[None, :]).astype(f32)  # [D, H]
    qbd = q[0][:, None] * mask * scale                              # [D, H]

    wks = (wk.T @ qbd).T                                            # [H, C]
    s_posT = ((pos[1:] @ wk.T + bk[None, :]) @ qbd).T               # [H, L]
    s_clsT = ((cls_row @ wk.T + bk[None, :]) @ qbd).T               # [H, 1]

    v_posT = (pos[1:] @ wv.T + bv[None, :]).T                       # [D, L]
    v_cls = cls_row @ wv.T + bv[None, :]                            # [1, D]

    # Padded score rows stacked on top of value rows: one fused projection
    # weight and one fused pos/bias term for the per-row matmul.
    wkv = jnp.zeros((F, C), f32).at[:H].set(wks).at[HP:].set(wv)
    posT = jnp.zeros((F, L), f32).at[:H].set(s_posT).at[HP:].set(v_posT)

    # Fused out_proj . c_proj; the last H rows carry the cls value row so the
    # kernel's appended p_cls columns pick it up in the same matmul.  Columns
    # are zero-padded to a 128 multiple so the pooled store is lane-dense.
    wcomb = wo.T @ wc.T                                             # [D, Do]
    bcomb = bo[None, :] @ wc.T + bc[None, :]                        # [1, Do]
    wcls = (mask.T * v_cls) @ wcomb                                 # [H, Do]
    w_ext = jnp.concatenate([wcomb, wcls], axis=0)                  # [D+H, Do]
    Do_p = _rup(Do, 128)
    Lp = _rup(L, 128)
    if Do_p > Do:
        w_ext = jnp.pad(w_ext, ((0, 0), (0, Do_p - Do)))
        bcomb = jnp.pad(bcomb, ((0, 0), (0, Do_p - Do)))

    wkv_in = wkv.astype(cdt)
    w_ext_in = w_ext.astype(cdt)

    # ---- block / VMEM sizing (tile-padded, generation-aware) ----------------
    wt_item = 2 if use_bf16 else 4
    x_item = x.dtype.itemsize
    w_sl = 16 if use_bf16 else 8
    Lr = _rup(L, 128)
    w_bytes = (_rup(F, w_sl) * _rup(C, 128) * wt_item     # wkv (single-buffered)
               + _rup(F, 8) * Lr * 4                      # posT
               + 8 * 128 * 4                              # scls
               + _rup(D + H, w_sl) * Do_p * wt_item       # w_ext
               + 8 * Do_p * 4)                            # bcomb
    per_b = (2 * _rup(C, 8) * Lr * x_item                 # x row, double-buffered
             + _rup(C, 16) * Lr * 2                       # in-kernel bf16 copy
             + 4 * _rup(F, 8) * Lr * 4                    # kv / p_full / products
             + 2 * 2 * (Do_p + Lp) * 4)                   # outputs, double-buffered
    budget, vmem_cap = _vmem_budget_bytes()
    headroom = 6 << 20
    bb_cap = max(8, (budget - w_bytes - headroom) // per_b)

    if block_b is not None:
        bb = int(block_b)
    elif B <= 8:
        bb = B                      # tiny batch: single step, block == full dim
    else:
        # multiple-of-8 sublane blocks, >=4 grid steps when the batch allows
        # (>=2 steps per TensorCore on the 2-core v7x), capped by VMEM.
        bb = min(int(bb_cap), 32, max(8, (B // 4) & ~7))
        bb = max(8, (bb // 8) * 8)
    Bp = -(-B // bb) * bb
    grid = (Bp // bb,)

    vmem_limit = int(min(max(w_bytes + bb * per_b + headroom, 32 << 20),
                         vmem_cap))

    x_in = x
    if Bp > B:      # ragged batch: zero-pad; padded rows are sliced off below
        x_in = jnp.concatenate(
            [x_in, jnp.zeros((Bp - B, C, L), x_in.dtype)], axis=0)

    def _wspec(shape):
        # constant 2-D weights: fetched once, single-buffered
        return pl.BlockSpec(shape, lambda i: (0, 0),
                            pipeline_mode=pl.Buffered(buffer_count=1))

    in_specs = [
        pl.BlockSpec((bb, C, L), lambda i: (i, 0, 0)),   # x (native [B, C, L])
        _wspec(wkv_in.shape),                            # fused score|value weight
        _wspec(posT.shape),                              # fused pos/bias terms
        _wspec(s_clsT.shape),                            # cls key score per head
        _wspec(w_ext_in.shape),                          # epilogue weight (+cls rows)
        _wspec(bcomb.shape),                             # epilogue bias
    ]
    out_specs = [
        pl.BlockSpec((bb, Do_p), lambda i: (i, 0)),
        pl.BlockSpec((bb, Lp), lambda i: (i, 0)),
    ]
    out_shape = [
        jax.ShapeDtypeStruct((Bp, Do_p), f32),
        jax.ShapeDtypeStruct((Bp, Lp), f32),
    ]

    cost = pl.CostEstimate(
        flops=int(2 * Bp * F * C * L + 2 * Bp * (D + H) * Do_p
                  + 6 * Bp * D * L),
        transcendentals=int(Bp * H * (L + 1)),
        bytes_accessed=int(x_in.size * x_item + wkv_in.size * wt_item
                           + posT.size * 4 + w_ext_in.size * wt_item
                           + Bp * (Do_p + Lp) * 4),
    )

    pooled, att = pl.pallas_call(
        functools.partial(_attn_pool_kernel, H, hd, HP, cdt),
        grid=grid,
        in_specs=in_specs,
        out_specs=out_specs,
        out_shape=out_shape,
        compiler_params=pltpu.CompilerParams(
            dimension_semantics=("parallel",),
            vmem_limit_bytes=vmem_limit),
        cost_estimate=cost,
    )(x_in, wkv_in, posT, s_clsT, w_ext_in, bcomb)

    pooled = pooled[:B, :Do].reshape(B, 1, Do)   # matches module output [B, 1, Do]
    att = att[:B, :L].reshape(B, 1, L)           # att_map[:, :, 1:] (cls col dropped)
    if B == 1:                                   # mirror PyTorch x.squeeze(0)
        pooled = jnp.squeeze(pooled, axis=0)
    return pooled, att


# ---------------------------------------------------------------------------
# Deterministic parameter init (PyTorch weight layouts) + pure-JAX reference.
# ---------------------------------------------------------------------------
def init_params(key, embed_dim, spacial_dim, output_dim):
    D, S, Do = embed_dim, spacial_dim + 1, output_dim
    ks = jax.random.split(key, 8)
    sd = 1.0 / math.sqrt(D)
    return {
        'pos_emb': (jax.random.normal(ks[0], (1, S, D)) / D).astype(jnp.float32),
        'cls_token': jax.random.normal(ks[1], (1, 1, D)).astype(jnp.float32),
        'in_proj_w': (sd * jax.random.normal(ks[2], (3 * D, D))).astype(jnp.float32),
        'in_proj_b': (0.02 * jax.random.normal(ks[3], (3 * D,))).astype(jnp.float32),
        'out_proj_w': (sd * jax.random.normal(ks[4], (D, D))).astype(jnp.float32),
        'out_proj_b': (0.02 * jax.random.normal(ks[5], (D,))).astype(jnp.float32),
        'c_proj_w': (sd * jax.random.normal(ks[6], (Do, D))).astype(jnp.float32),
        'c_proj_b': (0.02 * jax.random.normal(ks[7], (Do,))).astype(jnp.float32),
    }


def reference_forward(x, params, num_heads):
    B, C, L = x.shape
    D, S = C, L + 1
    f32 = jnp.float32
    pos = params['pos_emb'].astype(f32)
    cls = params['cls_token'].astype(f32)
    in_w, in_b = params['in_proj_w'], params['in_proj_b']
    wo, bo = params['out_proj_w'], params['out_proj_b']
    wc, bc = params['c_proj_w'], params['c_proj_b']

    xt = jnp.transpose(x.astype(f32), (0, 2, 1))                    # [B, L, D]
    cls_tok = jnp.broadcast_to(cls + pos[:, :1, :], (B, 1, D))
    seq = jnp.concatenate([cls_tok, xt], axis=1) + pos              # [B, S, D]
    q = seq[:, :1, :]
    wq, wk, wv = in_w[:D], in_w[D:2 * D], in_w[2 * D:]
    bq, bk, bv = in_b[:D], in_b[D:2 * D], in_b[2 * D:]
    qp = q @ wq.T + bq
    kp = seq @ wk.T + bk
    vp = seq @ wv.T + bv
    hd = D // num_heads
    qh = qp.reshape(B, 1, num_heads, hd).transpose(0, 2, 1, 3)
    kh = kp.reshape(B, S, num_heads, hd).transpose(0, 2, 1, 3)
    vh = vp.reshape(B, S, num_heads, hd).transpose(0, 2, 1, 3)
    s = jnp.einsum('bhqd,bhkd->bhqk', qh, kh) / math.sqrt(hd)
    p = jax.nn.softmax(s, axis=-1)                                  # [B,H,1,S]
    o = jnp.einsum('bhqk,bhkd->bhqd', p, vh).transpose(0, 2, 1, 3).reshape(B, 1, D)
    o = o @ wo.T + bo
    pooled = o @ wc.T + bc                                          # [B, 1, Do]
    att = jnp.mean(p, axis=1)                                       # [B, 1, S]
    if B == 1:
        pooled = jnp.squeeze(pooled, axis=0)
    return pooled, att[:, :, 1:]


if __name__ == "__main__":
    # Small stand-in shapes: batch=32 (-> grid of 4 blocks of 8, so >=2 steps
    # per TensorCore on v7x), embed_dim=32, spacial_dim=16 (token count),
    # num_heads=4 (head_dim=8, sublane aligned), output_dim=64.
    B, D, L, H, Do = 32, 32, 16, 4, 64

    key = jax.random.PRNGKey(0)
    kx, kp = jax.random.split(key)
    x = jax.random.normal(kx, (B, D, L), dtype=jnp.float32)   # module input [B, C, L]
    params = init_params(kp, D, L, Do)

    fwd = jax.jit(lambda xx, pp: attention_pool2d_forward(xx, pp, num_heads=H))
    pooled, att = fwd(x, params)
    pooled = jax.block_until_ready(pooled)
    att = jax.block_until_ready(att)

    ref_pooled, ref_att = reference_forward(x, params, H)
    # bf16 matmul inputs (f32 accumulate) + approx reciprocal -> loose-ish tol.
    np.testing.assert_allclose(np.asarray(pooled), np.asarray(ref_pooled),
                               rtol=2e-2, atol=1e-2)
    np.testing.assert_allclose(np.asarray(att), np.asarray(ref_att),
                               rtol=2e-2, atol=2e-3)
    assert pooled.shape == (B, 1, Do) and att.shape == (B, 1, L)

    print("KERNEL_OK")
</pallas_src>

<mosaic_0001>
module attributes {stable_mosaic.version = 11 : i64} {
  func.func @_attn_pool_kernel(%arg0: i32, %arg1: memref<8x32x16xf32, #tpu.memory_space<vmem>>, %arg2: memref<40x32xbf16, #tpu.memory_space<vmem>>, %arg3: memref<40x16xf32, #tpu.memory_space<vmem>>, %arg4: memref<4x1xf32, #tpu.memory_space<vmem>>, %arg5: memref<36x128xbf16, #tpu.memory_space<vmem>>, %arg6: memref<1x128xf32, #tpu.memory_space<vmem>>, %arg7: memref<8x128xf32, #tpu.memory_space<vmem>>, %arg8: memref<8x128xf32, #tpu.memory_space<vmem>>) attributes {dimension_semantics = [#tpu.dimension_semantics<parallel>], iteration_bounds = array<i64: 4>, scalar_prefetch = 0 : i64, scratch_operands = 0 : i64, tpu.core_type = #tpu.core_type<tc>, window_params = [{transform_indices = @transform_0, window_bounds = array<i64: 8, 32, 16>}, {pipeline_mode = #tpu.pipeline_mode<synchronous>, transform_indices = @transform_1, window_bounds = array<i64: 40, 32>}, {pipeline_mode = #tpu.pipeline_mode<synchronous>, transform_indices = @transform_2, window_bounds = array<i64: 40, 16>}, {pipeline_mode = #tpu.pipeline_mode<synchronous>, transform_indices = @transform_3, window_bounds = array<i64: 4, 1>}, {pipeline_mode = #tpu.pipeline_mode<synchronous>, transform_indices = @transform_4, window_bounds = array<i64: 36, 128>}, {pipeline_mode = #tpu.pipeline_mode<synchronous>, transform_indices = @transform_5, window_bounds = array<i64: 1, 128>}, {transform_indices = @transform_6, window_bounds = array<i64: 8, 128>}, {transform_indices = @transform_7, window_bounds = array<i64: 8, 128>}]} {
    %c0 = arith.constant 0 : index
    %c0_0 = arith.constant 0 : index
    %0 = vector.load %arg2[%c0, %c0_0] : memref<40x32xbf16, #tpu.memory_space<vmem>>, vector<40x32xbf16>
    %c0_1 = arith.constant 0 : index
    %c0_2 = arith.constant 0 : index
    %c0_3 = arith.constant 0 : index
    %1 = vector.load %arg1[%c0_1, %c0_2, %c0_3] : memref<8x32x16xf32, #tpu.memory_space<vmem>>, vector<1x32x16xf32>
    %2 = vector.shape_cast %1 : vector<1x32x16xf32> to vector<32x16xf32>
    %3 = arith.truncf %2 : vector<32x16xf32> to vector<32x16xbf16>
    %cst = arith.constant dense<0.000000e+00> : vector<40x16xf32>
    %4 = tpu.matmul %0, %3, %cst {dimension_numbers = #tpu.dot_dimension_numbers<[1], [0], [0], [1], [0, 0, 1, 1], [], []>} : vector<40x32xbf16>, vector<32x16xbf16>, vector<40x16xf32> -> vector<40x16xf32>
    %c1 = arith.constant 1 : index
    %c0_4 = arith.constant 0 : index
    %c0_5 = arith.constant 0 : index
    %5 = vector.load %arg1[%c1, %c0_4, %c0_5] : memref<8x32x16xf32, #tpu.memory_space<vmem>>, vector<1x32x16xf32>
    %6 = vector.shape_cast %5 : vector<1x32x16xf32> to vector<32x16xf32>
    %7 = arith.truncf %6 : vector<32x16xf32> to vector<32x16xbf16>
    %cst_6 = arith.constant dense<0.000000e+00> : vector<40x16xf32>
    %8 = tpu.matmul %0, %7, %cst_6 {dimension_numbers = #tpu.dot_dimension_numbers<[1], [0], [0], [1], [0, 0, 1, 1], [], []>} : vector<40x32xbf16>, vector<32x16xbf16>, vector<40x16xf32> -> vector<40x16xf32>
    %c2 = arith.constant 2 : index
    %c0_7 = arith.constant 0 : index
    %c0_8 = arith.constant 0 : index
    %9 = vector.load %arg1[%c2, %c0_7, %c0_8] : memref<8x32x16xf32, #tpu.memory_space<vmem>>, vector<1x32x16xf32>
    %10 = vector.shape_cast %9 : vector<1x32x16xf32> to vector<32x16xf32>
    %11 = arith.truncf %10 : vector<32x16xf32> to vector<32x16xbf16>
    %cst_9 = arith.constant dense<0.000000e+00> : vector<40x16xf32>
    %12 = tpu.matmul %0, %11, %cst_9 {dimension_numbers = #tpu.dot_dimension_numbers<[1], [0], [0], [1], [0, 0, 1, 1], [], []>} : vector<40x32xbf16>, vector<32x16xbf16>, vector<40x16xf32> -> vector<40x16xf32>
    %c3 = arith.constant 3 : index
    %c0_10 = arith.constant 0 : index
    %c0_11 = arith.constant 0 : index
    %13 = vector.load %arg1[%c3, %c0_10, %c0_11] : memref<8x32x16xf32, #tpu.memory_space<vmem>>, vector<1x32x16xf32>
    %14 = vector.shape_cast %13 : vector<1x32x16xf32> to vector<32x16xf32>
    %15 = arith.truncf %14 : vector<32x16xf32> to vector<32x16xbf16>
    %cst_12 = arith.constant dense<0.000000e+00> : vector<40x16xf32>
    %16 = tpu.matmul %0, %15, %cst_12 {dimension_numbers = #tpu.dot_dimension_numbers<[1], [0], [0], [1], [0, 0, 1, 1], [], []>} : vector<40x32xbf16>, vector<32x16xbf16>, vector<40x16xf32> -> vector<40x16xf32>
    %c4 = arith.constant 4 : index
    %c0_13 = arith.constant 0 : index
    %c0_14 = arith.constant 0 : index
    %17 = vector.load %arg1[%c4, %c0_13, %c0_14] : memref<8x32x16xf32, #tpu.memory_space<vmem>>, vector<1x32x16xf32>
    %18 = vector.shape_cast %17 : vector<1x32x16xf32> to vector<32x16xf32>
    %19 = arith.truncf %18 : vector<32x16xf32> to vector<32x16xbf16>
    %cst_15 = arith.constant dense<0.000000e+00> : vector<40x16xf32>
    %20 = tpu.matmul %0, %19, %cst_15 {dimension_numbers = #tpu.dot_dimension_numbers<[1], [0], [0], [1], [0, 0, 1, 1], [], []>} : vector<40x32xbf16>, vector<32x16xbf16>, vector<40x16xf32> -> vector<40x16xf32>
    %c5 = arith.constant 5 : index
    %c0_16 = arith.constant 0 : index
    %c0_17 = arith.constant 0 : index
    %21 = vector.load %arg1[%c5, %c0_16, %c0_17] : memref<8x32x16xf32, #tpu.memory_space<vmem>>, vector<1x32x16xf32>
    %22 = vector.shape_cast %21 : vector<1x32x16xf32> to vector<32x16xf32>
    %23 = arith.truncf %22 : vector<32x16xf32> to vector<32x16xbf16>
    %cst_18 = arith.constant dense<0.000000e+00> : vector<40x16xf32>
    %24 = tpu.matmul %0, %23, %cst_18 {dimension_numbers = #tpu.dot_dimension_numbers<[1], [0], [0], [1], [0, 0, 1, 1], [], []>} : vector<40x32xbf16>, vector<32x16xbf16>, vector<40x16xf32> -> vector<40x16xf32>
    %c6 = arith.constant 6 : index
    %c0_19 = arith.constant 0 : index
    %c0_20 = arith.constant 0 : index
    %25 = vector.load %arg1[%c6, %c0_19, %c0_20] : memref<8x32x16xf32, #tpu.memory_space<vmem>>, vector<1x32x16xf32>
    %26 = vector.shape_cast %25 : vector<1x32x16xf32> to vector<32x16xf32>
    %27 = arith.truncf %26 : vector<32x16xf32> to vector<32x16xbf16>
    %cst_21 = arith.constant dense<0.000000e+00> : vector<40x16xf32>
    %28 = tpu.matmul %0, %27, %cst_21 {dimension_numbers = #tpu.dot_dimension_numbers<[1], [0], [0], [1], [0, 0, 1, 1], [], []>} : vector<40x32xbf16>, vector<32x16xbf16>, vector<40x16xf32> -> vector<40x16xf32>
    %c7 = arith.constant 7 : index
    %c0_22 = arith.constant 0 : index
    %c0_23 = arith.constant 0 : index
    %29 = vector.load %arg1[%c7, %c0_22, %c0_23] : memref<8x32x16xf32, #tpu.memory_space<vmem>>, vector<1x32x16xf32>
    %30 = vector.shape_cast %29 : vector<1x32x16xf32> to vector<32x16xf32>
    %31 = arith.truncf %30 : vector<32x16xf32> to vector<32x16xbf16>
    %cst_24 = arith.constant dense<0.000000e+00> : vector<40x16xf32>
    %32 = tpu.matmul %0, %31, %cst_24 {dimension_numbers = #tpu.dot_dimension_numbers<[1], [0], [0], [1], [0, 0, 1, 1], [], []>} : vector<40x32xbf16>, vector<32x16xbf16>, vector<40x16xf32> -> vector<40x16xf32>
    %33 = vector.shape_cast %4 : vector<40x16xf32> to vector<1x40x16xf32>
    %34 = vector.shape_cast %8 : vector<40x16xf32> to vector<1x40x16xf32>
    %35 = vector.shape_cast %12 : vector<40x16xf32> to vector<1x40x16xf32>
    %36 = vector.shape_cast %16 : vector<40x16xf32> to vector<1x40x16xf32>
    %37 = vector.shape_cast %20 : vector<40x16xf32> to vector<1x40x16xf32>
    %38 = vector.shape_cast %24 : vector<40x16xf32> to vector<1x40x16xf32>
    %39 = vector.shape_cast %28 : vector<40x16xf32> to vector<1x40x16xf32>
    %40 = vector.shape_cast %32 : vector<40x16xf32> to vector<1x40x16xf32>
    %41 = tpu.concatenate %33, %34, %35, %36, %37, %38, %39, %40 in 0 : vector<1x40x16xf32>, vector<1x40x16xf32>, vector<1x40x16xf32>, vector<1x40x16xf32>, vector<1x40x16xf32>, vector<1x40x16xf32>, vector<1x40x16xf32>, vector<1x40x16xf32> -> vector<8x40x16xf32>
    %c0_25 = arith.constant 0 : index
    %c0_26 = arith.constant 0 : index
    %42 = vector.load %arg3[%c0_25, %c0_26] : memref<40x16xf32, #tpu.memory_space<vmem>>, vector<40x16xf32>
    %43 = vector.shape_cast %42 : vector<40x16xf32> to vector<1x40x16xf32>
    %44 = vector.broadcast %43 : vector<1x40x16xf32> to vector<8x40x16xf32>
    %45 = arith.addf %41, %44 : vector<8x40x16xf32>
    %46 = vector.extract_strided_slice %45 {offsets = [0, 0, 0], sizes = [8, 4, 16], strides = [1, 1, 1]} : vector<8x40x16xf32> to vector<8x4x16xf32>
    %47 = vector.extract_strided_slice %45 {offsets = [0, 8, 0], sizes = [8, 32, 16], strides = [1, 1, 1]} : vector<8x40x16xf32> to vector<8x32x16xf32>
    %c0_27 = arith.constant 0 : index
    %c0_28 = arith.constant 0 : index
    %48 = vector.load %arg4[%c0_27, %c0_28] : memref<4x1xf32, #tpu.memory_space<vmem>>, vector<4x1xf32>
    %49 = vector.shape_cast %48 : vector<4x1xf32> to vector<1x4x1xf32>
    %cst_29 = arith.constant dense<0xFF800000> : vector<8x4xf32>
    %50 = vector.multi_reduction <maximumf>, %46, %cst_29 [2] : vector<8x4x16xf32> to vector<8x4xf32>
    %51 = vector.shape_cast %50 : vector<8x4xf32> to vector<8x4x1xf32>
    %52 = vector.broadcast %49 : vector<1x4x1xf32> to vector<8x4x1xf32>
    %53 = arith.maximumf %51, %52 : vector<8x4x1xf32>
    %54 = vector.broadcast %53 : vector<8x4x1xf32> to vector<8x4x16xf32>
    %55 = arith.subf %46, %54 : vector<8x4x16xf32>
    %56 = math.exp %55 : vector<8x4x16xf32>
    %57 = vector.broadcast %49 : vector<1x4x1xf32> to vector<8x4x1xf32>
    %58 = arith.subf %57, %53 : vector<8x4x1xf32>
    %59 = math.exp %58 : vector<8x4x1xf32>
    %cst_30 = arith.constant dense<0.000000e+00> : vector<8x4xf32>
    %60 = vector.multi_reduction <add>, %56, %cst_30 [2] : vector<8x4x16xf32> to vector<8x4xf32>
    %61 = vector.shape_cast %60 : vector<8x4xf32> to vector<8x4x1xf32>
    %62 = arith.addf %61, %59 : vector<8x4x1xf32>
    %63 = tpu.reciprocal %62 {approx = true} : vector<8x4x1xf32> -> vector<8x4x1xf32>
    %64 = vector.broadcast %63 : vector<8x4x1xf32> to vector<8x4x16xf32>
    %65 = arith.mulf %56, %64 : vector<8x4x16xf32>
    %66 = arith.mulf %59, %63 : vector<8x4x1xf32>
    %cst_31 = arith.constant dense<0.000000e+00> : vector<8x16xf32>
    %67 = vector.multi_reduction <add>, %65, %cst_31 [1] : vector<8x4x16xf32> to vector<8x16xf32>
    %cst_32 = arith.constant 4.000000e+00 : f32
    %68 = vector.broadcast %cst_32 : f32 to vector<8x16xf32>
    %69 = arith.divf %67, %68 : vector<8x16xf32>
    %cst_33 = arith.constant 0.000000e+00 : f32
    %70 = vector.broadcast %cst_33 : f32 to vector<8x112xf32>
    %71 = tpu.concatenate %69, %70 in 1 : vector<8x16xf32>, vector<8x112xf32> -> vector<8x128xf32>
    %c0_34 = arith.constant 0 : index
    %c0_35 = arith.constant 0 : index
    %72 = vector.load %arg8[%c0_34, %c0_35] : memref<8x128xf32, #tpu.memory_space<vmem>>, vector<8x128xf32>
    tpu.vector_store %arg8[%c0_34, %c0_35], %71 {strides = array<i32>} : memref<8x128xf32, #tpu.memory_space<vmem>>, vector<8x128xf32>,
    %73 = vector.shape_cast %65 : vector<8x4x16xf32> to vector<8x4x1x16xf32>
    %74 = vector.shape_cast %73 : vector<8x4x1x16xf32> to vector<8x4x1x16xf32>
    %75 = vector.broadcast %74 : vector<8x4x1x16xf32> to vector<8x4x8x16xf32>
    %76 = vector.shape_cast %75 : vector<8x4x8x16xf32> to vector<8x32x16xf32>
    %77 = arith.mulf %76, %47 : vector<8x32x16xf32>
    %cst_36 = arith.constant dense<0.000000e+00> : vector<8x32xf32>
    %78 = vector.multi_reduction <add>, %77, %cst_36 [2] : vector<8x32x16xf32> to vector<8x32xf32>
    %79 = vector.shape_cast %66 : vector<8x4x1xf32> to vector<8x4xf32>
    %80 = tpu.concatenate %78, %79 in 1 : vector<8x32xf32>, vector<8x4xf32> -> vector<8x36xf32>
    %81 = arith.truncf %80 : vector<8x36xf32> to vector<8x36xbf16>
    %c0_37 = arith.constant 0 : index
    %c0_38 = arith.constant 0 : index
    %82 = vector.load %arg5[%c0_37, %c0_38] : memref<36x128xbf16, #tpu.memory_space<vmem>>, vector<36x128xbf16>
    %cst_39 = arith.constant dense<0.000000e+00> : vector<8x128xf32>
    %83 = tpu.matmul %81, %82, %cst_39 {dimension_numbers = #tpu.dot_dimension_numbers<[1], [0], [0], [1], [0, 0, 1, 1], [], []>} : vector<8x36xbf16>, vector<36x128xbf16>, vector<8x128xf32> -> vector<8x128xf32>
    %c0_40 = arith.constant 0 : index
    %c0_41 = arith.constant 0 : index
    %84 = vector.load %arg6[%c0_40, %c0_41] : memref<1x128xf32, #tpu.memory_space<vmem>>, vector<1x128xf32>
    %85 = vector.broadcast %84 : vector<1x128xf32> to vector<8x128xf32>
    %86 = arith.addf %83, %85 : vector<8x128xf32>
    %c0_42 = arith.constant 0 : index
    %c0_43 = arith.constant 0 : index
    %87 = vector.load %arg7[%c0_42, %c0_43] : memref<8x128xf32, #tpu.memory_space<vmem>>, vector<8x128xf32>
    tpu.vector_store %arg7[%c0_42, %c0_43], %86 {strides = array<i32>} : memref<8x128xf32, #tpu.memory_space<vmem>>, vector<8x128xf32>,
    return
  }
  func.func @transform_0(%arg0: i32) -> (i32, i32, i32) {
    %c0_i32 = arith.constant 0 : i32
    %c0_i32_0 = arith.constant 0 : i32
    %c0_i32_1 = arith.constant 0 : i32
    return %arg0, %c0_i32, %c0_i32_0 : i32, i32, i32
  }
  func.func @transform_1(%arg0: i32) -> (i32, i32) {
    %c0_i32 = arith.constant 0 : i32
    %c0_i32_0 = arith.constant 0 : i32
    %c0_i32_1 = arith.constant 0 : i32
    return %c0_i32, %c0_i32_0 : i32, i32
  }
  func.func @transform_2(%arg0: i32) -> (i32, i32) {
    %c0_i32 = arith.constant 0 : i32
    %c0_i32_0 = arith.constant 0 : i32
    %c0_i32_1 = arith.constant 0 : i32
    return %c0_i32, %c0_i32_0 : i32, i32
  }
  func.func @transform_3(%arg0: i32) -> (i32, i32) {
    %c0_i32 = arith.constant 0 : i32
    %c0_i32_0 = arith.constant 0 : i32
    %c0_i32_1 = arith.constant 0 : i32
    return %c0_i32, %c0_i32_0 : i32, i32
  }
  func.func @transform_4(%arg0: i32) -> (i32, i32) {
    %c0_i32 = arith.constant 0 : i32
    %c0_i32_0 = arith.constant 0 : i32
    %c0_i32_1 = arith.constant 0 : i32
    return %c0_i32, %c0_i32_0 : i32, i32
  }
  func.func @transform_5(%arg0: i32) -> (i32, i32) {
    %c0_i32 = arith.constant 0 : i32
    %c0_i32_0 = arith.constant 0 : i32
    %c0_i32_1 = arith.constant 0 : i32
    return %c0_i32, %c0_i32_0 : i32, i32
  }
  func.func @transform_6(%arg0: i32) -> (i32, i32) {
    %c0_i32 = arith.constant 0 : i32
    %c0_i32_0 = arith.constant 0 : i32
    return %arg0, %c0_i32 : i32, i32
  }
  func.func @transform_7(%arg0: i32) -> (i32, i32) {
    %c0_i32 = arith.constant 0 : i32
    %c0_i32_0 = arith.constant 0 : i32
    return %arg0, %c0_i32 : i32, i32
  }
}

</mosaic_0001>

<llo_original>
// kernel: _lambda_.1
$region0: #{_lambda_.1}
  #allocation0 [shape = 'u32[]', space=smem, size = 0x4, offset = 0x4, fixed_abs, tag = 'smem constant byte address 0x4 - core index']
  #allocation1 [shape = 'u32[144,128]{1,0:T(1,128)}', space=vmem, size = 0x12000, scoped, tag = 'internal scratch']
  %s0 = inlined_call_operand.vmem [shape: f32[32,32,16], index: 0, kind: input, shape index: {}]
  %s1 = inlined_call_operand.vmem [shape: bf16[40,32], index: 1, kind: input, shape index: {}]
  %s2 = inlined_call_operand.vmem [shape: f32[40,16], index: 2, kind: input, shape index: {}]
  %s3 = inlined_call_operand.vmem [shape: f32[4,1], index: 3, kind: input, shape index: {}]
  %s4 = inlined_call_operand.vmem [shape: bf16[36,128], index: 4, kind: input, shape index: {}]
  %s5 = inlined_call_operand.vmem [shape: f32[1,128], index: 5, kind: input, shape index: {}]
  %s6 = inlined_call_operand.hbm [shape: f32[32,128], index: 6, kind: output, shape index: {0}]
  %s7 = inlined_call_operand.vmem [shape: f32[32,128], index: 7, kind: output, shape index: {1}]
  %8 = xla_tuple %s6, %s7
  %s9 = sld [smem:[#allocation0]]
  $region65: #{_lambda_.1} parent=0
    _
  %s11 = ssub.s32 1, %s9
  %s12 = scalar_select 0, %s11, %s9
  $region1: #{_lambda_.1} parent=0
    #allocation2 [shape = 'u8[8192]{0}', space=vmem, size = 0x2000, scoped, tag = 'output window, operand 0']
    #allocation3 [shape = 's32[2]{0}', space=sflag, size = 0x8, scoped, tag = 'scoped memory for _lambda_.1']
    %13 = vsyncpa [#allocation3], 0
    %s14 = scalar_lea.sflag [#allocation3], 1
    %15 = vsyncpa %s14, 0
    loop: start=0, step=1, limit=6
    $region2: #{_lambda_.1} parent=1 // loop_pre_header
      _
    $region3: #{_lambda_.1} parent=1 // loop_header
      %s17 = sphi 0, %s21
      %p18 = scmp.ge.s32.totalorder %s17, 6
      %s27 = sphi 0, %s29
      %s30 = sphi 0, %s27
      %s31 = sphi 0, %s30
      %s47 = sphi 0, %s31
      %s51 = sphi 0, %s51
      %s53 = sphi 0, %s51
      %s54 = sphi 0, %s53
      %s68 = sphi 0, %s54
      %s72 = sphi 0, %s72
      %s74 = sphi 0, %s72
      %s75 = sphi 0, %s74
      %s89 = sphi 0, %s75
      %s93 = sphi 0, %s93
      %s95 = sphi 0, %s93
      %s96 = sphi 0, %s95
      %s110 = sphi 0, %s96
      %s114 = sphi 0, %s114
      %s116 = sphi 0, %s114
      %s117 = sphi 0, %s116
      %s131 = sphi 0, %s117
      %s135 = sphi 0, %s135
      %s137 = sphi 0, %s135
      %s138 = sphi 0, %s137
      %s152 = sphi 0, %s138
      %s158 = sphi 0, %s160
      %s161 = sphi 0, %s158
      %s162 = sphi 0, %s161
      %s178 = sphi 0, %s162
      %s184 = sphi 0, %s186
      %s187 = sphi 0, %s184
      %s188 = sphi 0, %s187
      %s204 = sphi 0, %s188
    $region4: #{_lambda_.1} parent=1 // loop_header_branch
      %20 = sbr.rel (%p18) target = $region8
    $region5: #{_lambda_.1} parent=1 // loop_body
      %s22 = ssub.s32 %s17, 1
      %s23 = ssub.s32 %s17, 2
      %s24 = sadd.s32 %s17, 1
      %s25 = ssub.s32 %s17, %s24
      %p26 = scmp.eq.s32.totalorder %s25, 0
      %s28 = sadd.s32 %s27, 1
      %s29 = scalar_select %p26, %s27, %s28
      %p32 = pneg %p26
      %p33 = scmp.eq.s32.totalorder %s17, 3
      %p34 = por %p32, %p33
      %p35 = scmp.ne.s32.totalorder %s27, %s30
      %p36 = scmp.eq.s32.totalorder %s17, 0
      %p37 = por %p35, %p36
      %p38 = scmp.ne.s32.totalorder %s27, %s30
      %p39 = scmp.eq.s32.totalorder %s22, 3
      %p40 = por %p38, %p39
      %p41 = scmp.ne.s32.totalorder %s30, %s31
      %p42 = scmp.eq.s32.totalorder %s22, 0
      %p43 = por %p41, %p42
      %p44 = scmp.ne.s32.totalorder %s30, %s31
      %p45 = scmp.eq.s32.totalorder %s23, 3
      %p46 = por %p44, %p45
      %p48 = scmp.ne.s32.totalorder %s31, %s47
      %p49 = scmp.eq.s32.totalorder %s23, 0
      %p50 = por %p48, %p49
      %s52 = sadd.s32 %s51, 1
      %p55 = scmp.eq.s32.totalorder %s17, 3
      %p56 = scmp.ne.s32.totalorder %s51, %s53
      %p57 = scmp.eq.s32.totalorder %s17, 0
      %p58 = por %p56, %p57
      %p59 = scmp.ne.s32.totalorder %s51, %s53
      %p60 = scmp.eq.s32.totalorder %s22, 3
      %p61 = por %p59, %p60
      %p62 = scmp.ne.s32.totalorder %s53, %s54
      %p63 = scmp.eq.s32.totalorder %s22, 0
      %p64 = por %p62, %p63
      %p65 = scmp.ne.s32.totalorder %s53, %s54
      %p66 = scmp.eq.s32.totalorder %s23, 3
      %p67 = por %p65, %p66
      %p69 = scmp.ne.s32.totalorder %s54, %s68
      %p70 = scmp.eq.s32.totalorder %s23, 0
      %p71 = por %p69, %p70
      %s73 = sadd.s32 %s72, 1
      %p76 = scmp.eq.s32.totalorder %s17, 3
      %p77 = scmp.ne.s32.totalorder %s72, %s74
      %p78 = scmp.eq.s32.totalorder %s17, 0
      %p79 = por %p77, %p78
      %p80 = scmp.ne.s32.totalorder %s72, %s74
      %p81 = scmp.eq.s32.totalorder %s22, 3
      %p82 = por %p80, %p81
      %p83 = scmp.ne.s32.totalorder %s74, %s75
      %p84 = scmp.eq.s32.totalorder %s22, 0
      %p85 = por %p83, %p84
      %p86 = scmp.ne.s32.totalorder %s74, %s75
      %p87 = scmp.eq.s32.totalorder %s23, 3
      %p88 = por %p86, %p87
      %p90 = scmp.ne.s32.totalorder %s75, %s89
      %p91 = scmp.eq.s32.totalorder %s23, 0
      %p92 = por %p90, %p91
      %s94 = sadd.s32 %s93, 1
      %p97 = scmp.eq.s32.totalorder %s17, 3
      %p98 = scmp.ne.s32.totalorder %s93, %s95
      %p99 = scmp.eq.s32.totalorder %s17, 0
      %p100 = por %p98, %p99
      %p101 = scmp.ne.s32.totalorder %s93, %s95
      %p102 = scmp.eq.s32.totalorder %s22, 3
      %p103 = por %p101, %p102
      %p104 = scmp.ne.s32.totalorder %s95, %s96
      %p105 = scmp.eq.s32.totalorder %s22, 0
      %p106 = por %p104, %p105
      %p107 = scmp.ne.s32.totalorder %s95, %s96
      %p108 = scmp.eq.s32.totalorder %s23, 3
      %p109 = por %p107, %p108
      %p111 = scmp.ne.s32.totalorder %s96, %s110
      %p112 = scmp.eq.s32.totalorder %s23, 0
      %p113 = por %p111, %p112
      %s115 = sadd.s32 %s114, 1
      %p118 = scmp.eq.s32.totalorder %s17, 3
      %p119 = scmp.ne.s32.totalorder %s114, %s116
      %p120 = scmp.eq.s32.totalorder %s17, 0
      %p121 = por %p119, %p120
      %p122 = scmp.ne.s32.totalorder %s114, %s116
      %p123 = scmp.eq.s32.totalorder %s22, 3
      %p124 = por %p122, %p123
      %p125 = scmp.ne.s32.totalorder %s116, %s117
      %p126 = scmp.eq.s32.totalorder %s22, 0
      %p127 = por %p125, %p126
      %p128 = scmp.ne.s32.totalorder %s116, %s117
      %p129 = scmp.eq.s32.totalorder %s23, 3
      %p130 = por %p128, %p129
      %p132 = scmp.ne.s32.totalorder %s117, %s131
      %p133 = scmp.eq.s32.totalorder %s23, 0
      %p134 = por %p132, %p133
      %s136 = sadd.s32 %s135, 1
      %p139 = scmp.eq.s32.totalorder %s17, 3
      %p140 = scmp.ne.s32.totalorder %s135, %s137
      %p141 = scmp.eq.s32.totalorder %s17, 0
      %p142 = por %p140, %p141
      %p143 = scmp.ne.s32.totalorder %s135, %s137
      %p144 = scmp.eq.s32.totalorder %s22, 3
      %p145 = por %p143, %p144
      %p146 = scmp.ne.s32.totalorder %s137, %s138
      %p147 = scmp.eq.s32.totalorder %s22, 0
      %p148 = por %p146, %p147
      %p149 = scmp.ne.s32.totalorder %s137, %s138
      %p150 = scmp.eq.s32.totalorder %s23, 3
      %p151 = por %p149, %p150
      %p153 = scmp.ne.s32.totalorder %s138, %s152
      %p154 = scmp.eq.s32.totalorder %s23, 0
      %p155 = por %p153, %p154
      %s156 = ssub.s32 %s17, %s24
      %p157 = scmp.eq.s32.totalorder %s156, 0
      %s159 = sadd.s32 %s158, 1
      %s160 = scalar_select %p157, %s158, %s159
      %p163 = pneg %p157
      %p164 = scmp.eq.s32.totalorder %s17, 3
      %p165 = por %p163, %p164
      %p166 = scmp.ne.s32.totalorder %s158, %s161
      %p167 = scmp.eq.s32.totalorder %s17, 0
      %p168 = por %p166, %p167
      %p169 = scmp.ne.s32.totalorder %s158, %s161
      %p170 = scmp.eq.s32.totalorder %s22, 3
      %p171 = por %p169, %p170
      %p172 = scmp.ne.s32.totalorder %s161, %s162
      %p173 = scmp.eq.s32.totalorder %s22, 0
      %p174 = por %p172, %p173
      %p175 = scmp.ne.s32.totalorder %s161, %s162
      %p176 = scmp.eq.s32.totalorder %s23, 3
      %p177 = por %p175, %p176
      %p179 = scmp.ne.s32.totalorder %s162, %s178
      %p180 = scmp.eq.s32.totalorder %s23, 0
      %p181 = por %p179, %p180
      %s182 = ssub.s32 %s17, %s24
      %p183 = scmp.eq.s32.totalorder %s182, 0
      %s185 = sadd.s32 %s184, 1
      %s186 = scalar_select %p183, %s184, %s185
      %p189 = pneg %p183
      %p190 = scmp.eq.s32.totalorder %s17, 3
      %p191 = por %p189, %p190
      %p192 = scmp.ne.s32.totalorder %s184, %s187
      %p193 = scmp.eq.s32.totalorder %s17, 0
      %p194 = por %p192, %p193
      %p195 = scmp.ne.s32.totalorder %s184, %s187
      %p196 = scmp.eq.s32.totalorder %s22, 3
      %p197 = por %p195, %p196
      %p198 = scmp.ne.s32.totalorder %s187, %s188
      %p199 = scmp.eq.s32.totalorder %s22, 0
      %p200 = por %p198, %p199
      %p201 = scmp.ne.s32.totalorder %s187, %s188
      %p202 = scmp.eq.s32.totalorder %s23, 3
      %p203 = por %p201, %p202
      %p205 = scmp.ne.s32.totalorder %s188, %s204
      %p206 = scmp.eq.s32.totalorder %s23, 0
      %p207 = por %p205, %p206
      %p208 = scmp.le.s32.totalorder 1, %s17
      %p209 = scmp.lt.s32.totalorder %s17, 5
      %p210 = pnand %p208, %p209
      %p211 = pneg %p210
      // Predicated region
      $region9: #{_lambda_.1} parent=5 // pred_check
        _
      $region10: #{_lambda_.1} parent=5 // pred_check_branch
        %213 = sbr.rel (%p210) target = $region12
      $region11: #{_lambda_.1} parent=5 // pred_region
        %s214 = ssub.s32 %s17, 1
        // Predicated region
        $region13: #{_lambda_.1} parent=11 // pred_check
          %p215 = pneg %p64
        $region14: #{_lambda_.1} parent=11 // pred_check_branch
          %217 = sbr.rel (%p215) target = $region16
        $region15: #{_lambda_.1} parent=11 // pred_region
          _
        $region16: #{_lambda_.1} parent=11 // pred_fallthru
          _
        // Predicated region
        $region17: #{_lambda_.1} parent=11 // pred_check
          %p218 = pneg %p85
        $region18: #{_lambda_.1} parent=11 // pred_check_branch
          %220 = sbr.rel (%p218) target = $region20
        $region19: #{_lambda_.1} parent=11 // pred_region
          _
        $region20: #{_lambda_.1} parent=11 // pred_fallthru
          _
        // Predicated region
        $region21: #{_lambda_.1} parent=11 // pred_check
          %p221 = pneg %p106
        $region22: #{_lambda_.1} parent=11 // pred_check_branch
          %223 = sbr.rel (%p221) target = $region24
        $region23: #{_lambda_.1} parent=11 // pred_region
          _
        $region24: #{_lambda_.1} parent=11 // pred_fallthru
          _
        // Predicated region
        $region25: #{_lambda_.1} parent=11 // pred_check
          %p224 = pneg %p127
        $region26: #{_lambda_.1} parent=11 // pred_check_branch
          %226 = sbr.rel (%p224) target = $region28
        $region27: #{_lambda_.1} parent=11 // pred_region
          _
        $region28: #{_lambda_.1} parent=11 // pred_fallthru
          _
        // Predicated region
        $region29: #{_lambda_.1} parent=11 // pred_check
          %p227 = pneg %p148
        $region30: #{_lambda_.1} parent=11 // pred_check_branch
          %229 = sbr.rel (%p227) target = $region32
        $region31: #{_lambda_.1} parent=11 // pred_region
          _
        $region32: #{_lambda_.1} parent=11 // pred_fallthru
          _
      $region12: #{_lambda_.1} parent=5 // pred_fallthru
        _
      %p230 = scmp.lt.s32.totalorder %s17, 4
      // Predicated region
      $region33: #{_lambda_.1} parent=5 // pred_check
        %p231 = pneg %p230
      $region34: #{_lambda_.1} parent=5 // pred_check_branch
        %233 = sbr.rel (%p231) target = $region36
      $region35: #{_lambda_.1} parent=5 // pred_region
        // Predicated region
        $region37: #{_lambda_.1} parent=35 // pred_check
          %p234 = pneg %p37
        $region38: #{_lambda_.1} parent=35 // pred_check_branch
          %236 = sbr.rel (%p234) target = $region40
        $region39: #{_lambda_.1} parent=35 // pred_region
          %s237 = smul.u32 8, %s17
          %p238 = scmp.lt.s32.totalorder %s237, 31
          %s239 = scalar_select %p238, %s237, 31
          %s240 = smul.addr %s239, 4
          %s241 = smul.addr %s240, 8
          %s242 = scalar_lea.vmem %s0, %s241
          %s243 = smul.u32 8, %s17
        $region40: #{_lambda_.1} parent=35 // pred_fallthru
          _
      $region36: #{_lambda_.1} parent=5 // pred_fallthru
        _
      %p244 = scmp.le.s32.totalorder 1, %s17
      %p245 = scmp.lt.s32.totalorder %s17, 5
      %p246 = pnand %p244, %p245
      %p247 = pneg %p246
      // Predicated region
      $region41: #{_lambda_.1} parent=5 // pred_check
        _
      $region42: #{_lambda_.1} parent=5 // pred_check_branch
        %249 = sbr.rel (%p246) target = $region44
      $region43: #{_lambda_.1} parent=5 // pred_region
        %s250 = ssub.s32 %s17, 1
        %s251 = smul.u32 8, %s22
        %p252 = scmp.lt.s32.totalorder %s251, 31
        %s253 = scalar_select %p252, %s251, 31
        %s254 = smul.addr %s253, 4
        %s255 = smul.addr %s254, 8
        %s256 = scalar_lea.vmem %s0, %s255
        %p257 = pneg %p43
        %p258 = pneg %p40
        %p259 = pneg %p64
        %p260 = pneg %p61
        %p261 = pneg %p85
        %p262 = pneg %p82
        %p263 = pneg %p106
        %p264 = pneg %p103
        %p265 = pneg %p127
        %p266 = pneg %p124
        %p267 = pneg %p148
        %p268 = pneg %p145
        %p269 = pneg %p174
        %p270 = pneg %p171
        %s271 = sand.u32 %s161, 1
        %s272 = scalar_lea.sflag [#allocation3], %s271
        %s273 = sand.u32 %s161, 1
        %s274 = smul.addr %s273, 8
        %s275 = scalar_lea.vmem [#allocation2], %s274
        %p276 = pneg %p200
        %p277 = pneg %p197
        %p278 = scmp.lt.s32.totalorder %s22, 3
        %s279 = scalar_select %p278, %s22, 3
        %s280 = smul.addr %s279, 8
        %s281 = scalar_lea.vmem %s7, %s280
        %s282 = smul.u32 8, %s22
        %p283 = scmp.lt.s32.totalorder %s282, 31
        %s284 = scalar_select %p283, %s282, 31
        %s285 = smul.addr %s284, 4
        %s286 = smul.addr %s285, 8
        %s287 = scalar_lea.vmem %s0, %s286
        %s288 = smul.u32 8, %s22
        %p289 = scmp.lt.s32.totalorder %s22, 3
        %s290 = scalar_select %p289, %s22, 3
        %s291 = smul.addr %s290, 8
        %s292 = scalar_lea.vmem %s7, %s291
        %v294 = vld [vmem:[%s1] sm:$0xf]
        %v295 = vld [vmem:[%s1 + $0x4] sm:$0xf]
        %v296 = vld [vmem:[%s1 + $0x8] sm:$0xf]
        %v297 = vld [vmem:[%s1 + $0xc] sm:$0xf]
        %v298 = vld [vmem:[%s1 + $0x10] sm:$0xf]
        %v299 = vld [vmem:[%s287] sm:$0xff]
        %v300 = vld [vmem:[%s287 + $0x8] sm:$0xff]
        %v301 = vld [vmem:[%s287 + $0x10] sm:$0xff]
        %v302 = vld [vmem:[%s287 + $0x18] sm:$0xff]
        %v303 = vpack.c.bf16 %v300, %v299
        %v304 = vpack.c.bf16 %v302, %v301
        %v310 = vunpack.c.l.b16 %v294
        %v311 = vunpack.c.l.b16 %v295
        %v312 = vunpack.c.l.b16 %v296
        %v313 = vunpack.c.l.b16 %v297
        %v314 = vunpack.c.l.b16 %v298
        %v315 = vpack.c.b16 %v311, %v310
        %v316 = vpack.c.b16 %v313, %v312
        %v317 = vpack.c.b16 %v314, %v314
        %vm318 = vcmask 261120
        %v320 = vsel %vm318, %v315, 0
        %v323 = vsel %vm318, %v316, 0
        %v326 = vsel %vm318, %v317, 0
        %328 = vmatprep.subr.bf16.mxu0 0
        %329 = vmatpush1.bf16.msra.mxu0 0
        %330 = vmatprep.subr.bf16.mxu0 0
        %331 = vmatpush1.bf16.msra.mxu0 0
        %332 = vmatprep.subr.bf16.mxu0 0
        %333 = vmatpush1.bf16.msra.mxu0 0
        %334 = vmatprep.subr.bf16.mxu0 0
        %335 = vmatpush1.bf16.msra.mxu0 0
        %336 = vmatprep.subr.bf16.mxu0 0
        %337 = vmatpush1.bf16.msra.mxu0 0
        %338 = vmatprep.subr.bf16.mxu0 0
        %339 = vmatpush1.bf16.msra.mxu0 0
        %340 = vmatprep.subr.bf16.mxu0 0
        %341 = vmatpush1.bf16.msra.mxu0 %v304
        %342 = vmatprep.subr.bf16.mxu0 0
        %343 = vmatpush1.bf16.msra.mxu0 %v303
        %344 = vmatprep.subr.bf16.mxu0 0
        %345 = vmatpush2.bf16.msra.mxu0 0
        %346 = vmatprep.subr.bf16.mxu0 0
        %347 = vmatpush2.bf16.msra.mxu0 0
        %348 = vmatprep.subr.bf16.mxu0 0
        %349 = vmatpush2.bf16.msra.mxu0 0
        %350 = vmatprep.subr.bf16.mxu0 0
        %351 = vmatpush2.bf16.msra.mxu0 0
        %352 = vmatprep.subr.bf16.mxu0 0
        %353 = vmatpush2.bf16.msra.mxu0 0
        %354 = vmatprep.subr.bf16.mxu0 0
        %355 = vmatpush2.bf16.msra.mxu0 0
        %356 = vmatprep.subr.bf16.mxu0 0
        %357 = vmatpush2.bf16.msra.mxu0 0
        %358 = vmatprep.subr.bf16.mxu0 0
        %359 = vmatpush2.bf16.msra.mxu0 0
        %360 = vmatprep.mubr.bf16.mxu0 0
        %361 = vmatmul.mubr.bf16.gmra.mxu0 %v320
        %v362 = vpop.f32.mrf.mxu0
        %v363 = vadd.f32 0.0, %v362
        %v364 = vpop.f32.mrf.mxu0
        %v365 = vpop.f32.mrf.mxu0
        %v366 = vadd.f32 0.0, %v365
        %v367 = vpop.f32.mrf.mxu0
        %368 = vmatprep.mubr.bf16.mxu0 0
        %369 = vmatmul.mubr.bf16.gmra.mxu0 %v323
        %v370 = vpop.f32.mrf.mxu0
        %v371 = vadd.f32 0.0, %v370
        %v372 = vpop.f32.mrf.mxu0
        %v373 = vpop.f32.mrf.mxu0
        %v374 = vadd.f32 0.0, %v373
        %v375 = vpop.f32.mrf.mxu0
        %376 = vmatprep.mubr.bf16.mxu0 0
        %377 = vmatmul.mubr.bf16.gmra.mxu0 %v326
        %v378 = vpop.f32.mrf.mxu0
        %v379 = vadd.f32 0.0, %v378
        %v380 = vpop.f32.mrf.mxu0
        %v381 = vpop.f32.mrf.mxu0
        %v382 = vpop.f32.mrf.mxu0
        %383 = vdwg.mxu0
        %s384 = scalar_lea.vmem %s287, 32
        %v385 = vld [vmem:[%s384] sm:$0xff]
        %v386 = vld [vmem:[%s384 + $0x8] sm:$0xff]
        %v387 = vld [vmem:[%s384 + $0x10] sm:$0xff]
        %v388 = vld [vmem:[%s384 + $0x18] sm:$0xff]
        %v389 = vpack.c.bf16 %v386, %v385
        %v390 = vpack.c.bf16 %v388, %v387
        %391 = vmatprep.subr.bf16.mxu0 0
        %392 = vmatpush1.bf16.msra.mxu0 0
        %393 = vmatprep.subr.bf16.mxu0 0
        %394 = vmatpush1.bf16.msra.mxu0 0
        %395 = vmatprep.subr.bf16.mxu0 0
        %396 = vmatpush1.bf16.msra.mxu0 0
        %397 = vmatprep.subr.bf16.mxu0 0
        %398 = vmatpush1.bf16.msra.mxu0 0
        %399 = vmatprep.subr.bf16.mxu0 0
        %400 = vmatpush1.bf16.msra.mxu0 0
        %401 = vmatprep.subr.bf16.mxu0 0
        %402 = vmatpush1.bf16.msra.mxu0 0
        %403 = vmatprep.subr.bf16.mxu0 0
        %404 = vmatpush1.bf16.msra.mxu0 %v390
        %405 = vmatprep.subr.bf16.mxu0 0
        %406 = vmatpush1.bf16.msra.mxu0 %v389
        %407 = vmatprep.subr.bf16.mxu0 0
        %408 = vmatpush2.bf16.msra.mxu0 0
        %409 = vmatprep.subr.bf16.mxu0 0
        %410 = vmatpush2.bf16.msra.mxu0 0
        %411 = vmatprep.subr.bf16.mxu0 0
        %412 = vmatpush2.bf16.msra.mxu0 0
        %413 = vmatprep.subr.bf16.mxu0 0
        %414 = vmatpush2.bf16.msra.mxu0 0
        %415 = vmatprep.subr.bf16.mxu0 0
        %416 = vmatpush2.bf16.msra.mxu0 0
        %417 = vmatprep.subr.bf16.mxu0 0
        %418 = vmatpush2.bf16.msra.mxu0 0
        %419 = vmatprep.subr.bf16.mxu0 0
        %420 = vmatpush2.bf16.msra.mxu0 0
        %421 = vmatprep.subr.bf16.mxu0 0
        %422 = vmatpush2.bf16.msra.mxu0 0
        %423 = vmatprep.mubr.bf16.mxu0 0
        %424 = vmatmul.mubr.bf16.gmra.mxu0 %v320
        %v425 = vpop.f32.mrf.mxu0
        %v426 = vadd.f32 0.0, %v425
        %v427 = vpop.f32.mrf.mxu0
        %v428 = vpop.f32.mrf.mxu0
        %v429 = vadd.f32 0.0, %v428
        %v430 = vpop.f32.mrf.mxu0
        %431 = vmatprep.mubr.bf16.mxu0 0
        %432 = vmatmul.mubr.bf16.gmra.mxu0 %v323
        %v433 = vpop.f32.mrf.mxu0
        %v434 = vadd.f32 0.0, %v433
        %v435 = vpop.f32.mrf.mxu0
        %v436 = vpop.f32.mrf.mxu0
        %v437 = vadd.f32 0.0, %v436
        %v438 = vpop.f32.mrf.mxu0
        %439 = vmatprep.mubr.bf16.mxu0 0
        %440 = vmatmul.mubr.bf16.gmra.mxu0 %v326
        %v441 = vpop.f32.mrf.mxu0
        %v442 = vadd.f32 0.0, %v441
        %v443 = vpop.f32.mrf.mxu0
        %v444 = vpop.f32.mrf.mxu0
        %v445 = vpop.f32.mrf.mxu0
        %446 = vdwg.mxu0
        %s447 = scalar_lea.vmem %s287, 64
        %v448 = vld [vmem:[%s447] sm:$0xff]
        %v449 = vld [vmem:[%s447 + $0x8] sm:$0xff]
        %v450 = vld [vmem:[%s447 + $0x10] sm:$0xff]
        %v451 = vld [vmem:[%s447 + $0x18] sm:$0xff]
        %v452 = vpack.c.bf16 %v449, %v448
        %v453 = vpack.c.bf16 %v451, %v450
        %454 = vmatprep.subr.bf16.mxu0 0
        %455 = vmatpush1.bf16.msra.mxu0 0
        %456 = vmatprep.subr.bf16.mxu0 0
        %457 = vmatpush1.bf16.msra.mxu0 0
        %458 = vmatprep.subr.bf16.mxu0 0
        %459 = vmatpush1.bf16.msra.mxu0 0
        %460 = vmatprep.subr.bf16.mxu0 0
        %461 = vmatpush1.bf16.msra.mxu0 0
        %462 = vmatprep.subr.bf16.mxu0 0
        %463 = vmatpush1.bf16.msra.mxu0 0
        %464 = vmatprep.subr.bf16.mxu0 0
        %465 = vmatpush1.bf16.msra.mxu0 0
        %466 = vmatprep.subr.bf16.mxu0 0
        %467 = vmatpush1.bf16.msra.mxu0 %v453
        %468 = vmatprep.subr.bf16.mxu0 0
        %469 = vmatpush1.bf16.msra.mxu0 %v452
        %470 = vmatprep.subr.bf16.mxu0 0
        %471 = vmatpush2.bf16.msra.mxu0 0
        %472 = vmatprep.subr.bf16.mxu0 0
        %473 = vmatpush2.bf16.msra.mxu0 0
        %474 = vmatprep.subr.bf16.mxu0 0
        %475 = vmatpush2.bf16.msra.mxu0 0
        %476 = vmatprep.subr.bf16.mxu0 0
        %477 = vmatpush2.bf16.msra.mxu0 0
        %478 = vmatprep.subr.bf16.mxu0 0
        %479 = vmatpush2.bf16.msra.mxu0 0
        %480 = vmatprep.subr.bf16.mxu0 0
        %481 = vmatpush2.bf16.msra.mxu0 0
        %482 = vmatprep.subr.bf16.mxu0 0
        %483 = vmatpush2.bf16.msra.mxu0 0
        %484 = vmatprep.subr.bf16.mxu0 0
        %485 = vmatpush2.bf16.msra.mxu0 0
        %486 = vmatprep.mubr.bf16.mxu0 0
        %487 = vmatmul.mubr.bf16.gmra.mxu0 %v320
        %v488 = vpop.f32.mrf.mxu0
        %v489 = vadd.f32 0.0, %v488
        %v490 = vpop.f32.mrf.mxu0
        %v491 = vpop.f32.mrf.mxu0
        %v492 = vadd.f32 0.0, %v491
        %v493 = vpop.f32.mrf.mxu0
        %494 = vmatprep.mubr.bf16.mxu0 0
        %495 = vmatmul.mubr.bf16.gmra.mxu0 %v323
        %v496 = vpop.f32.mrf.mxu0
        %v497 = vadd.f32 0.0, %v496
        %v498 = vpop.f32.mrf.mxu0
        %v499 = vpop.f32.mrf.mxu0
        %v500 = vadd.f32 0.0, %v499
        %v501 = vpop.f32.mrf.mxu0
        %502 = vmatprep.mubr.bf16.mxu0 0
        %503 = vmatmul.mubr.bf16.gmra.mxu0 %v326
        %v504 = vpop.f32.mrf.mxu0
        %v505 = vadd.f32 0.0, %v504
        %v506 = vpop.f32.mrf.mxu0
        %v507 = vpop.f32.mrf.mxu0
        %v508 = vpop.f32.mrf.mxu0
        %509 = vdwg.mxu0
        %s510 = scalar_lea.vmem %s287, 96
        %v511 = vld [vmem:[%s510] sm:$0xff]
        %v512 = vld [vmem:[%s510 + $0x8] sm:$0xff]
        %v513 = vld [vmem:[%s510 + $0x10] sm:$0xff]
        %v514 = vld [vmem:[%s510 + $0x18] sm:$0xff]
        %v515 = vpack.c.bf16 %v512, %v511
        %v516 = vpack.c.bf16 %v514, %v513
        %517 = vmatprep.subr.bf16.mxu0 0
        %518 = vmatpush1.bf16.msra.mxu0 0
        %519 = vmatprep.subr.bf16.mxu0 0
        %520 = vmatpush1.bf16.msra.mxu0 0
        %521 = vmatprep.subr.bf16.mxu0 0
        %522 = vmatpush1.bf16.msra.mxu0 0
        %523 = vmatprep.subr.bf16.mxu0 0
        %524 = vmatpush1.bf16.msra.mxu0 0
        %525 = vmatprep.subr.bf16.mxu0 0
        %526 = vmatpush1.bf16.msra.mxu0 0
        %527 = vmatprep.subr.bf16.mxu0 0
        %528 = vmatpush1.bf16.msra.mxu0 0
        %529 = vmatprep.subr.bf16.mxu0 0
        %530 = vmatpush1.bf16.msra.mxu0 %v516
        %531 = vmatprep.subr.bf16.mxu0 0
        %532 = vmatpush1.bf16.msra.mxu0 %v515
        %533 = vmatprep.subr.bf16.mxu0 0
        %534 = vmatpush2.bf16.msra.mxu0 0
        %535 = vmatprep.subr.bf16.mxu0 0
        %536 = vmatpush2.bf16.msra.mxu0 0
        %537 = vmatprep.subr.bf16.mxu0 0
        %538 = vmatpush2.bf16.msra.mxu0 0
        %539 = vmatprep.subr.bf16.mxu0 0
        %540 = vmatpush2.bf16.msra.mxu0 0
        %541 = vmatprep.subr.bf16.mxu0 0
        %542 = vmatpush2.bf16.msra.mxu0 0
        %543 = vmatprep.subr.bf16.mxu0 0
        %544 = vmatpush2.bf16.msra.mxu0 0
        %545 = vmatprep.subr.bf16.mxu0 0
        %546 = vmatpush2.bf16.msra.mxu0 0
        %547 = vmatprep.subr.bf16.mxu0 0
        %548 = vmatpush2.bf16.msra.mxu0 0
        %549 = vmatprep.mubr.bf16.mxu0 0
        %550 = vmatmul.mubr.bf16.gmra.mxu0 %v320
        %v551 = vpop.f32.mrf.mxu0
        %v552 = vadd.f32 0.0, %v551
        %v553 = vpop.f32.mrf.mxu0
        %v554 = vpop.f32.mrf.mxu0
        %v555 = vadd.f32 0.0, %v554
        %v556 = vpop.f32.mrf.mxu0
        %557 = vmatprep.mubr.bf16.mxu0 0
        %558 = vmatmul.mubr.bf16.gmra.mxu0 %v323
        %v559 = vpop.f32.mrf.mxu0
        %v560 = vadd.f32 0.0, %v559
        %v561 = vpop.f32.mrf.mxu0
        %v562 = vpop.f32.mrf.mxu0
        %v563 = vadd.f32 0.0, %v562
        %v564 = vpop.f32.mrf.mxu0
        %565 = vmatprep.mubr.bf16.mxu0 0
        %566 = vmatmul.mubr.bf16.gmra.mxu0 %v326
        %v567 = vpop.f32.mrf.mxu0
        %v568 = vadd.f32 0.0, %v567
        %v569 = vpop.f32.mrf.mxu0
        %v570 = vpop.f32.mrf.mxu0
        %v571 = vpop.f32.mrf.mxu0
        %572 = vdwg.mxu0
        %s573 = scalar_lea.vmem %s287, 128
        %v574 = vld [vmem:[%s573] sm:$0xff]
        %v575 = vld [vmem:[%s573 + $0x8] sm:$0xff]
        %v576 = vld [vmem:[%s573 + $0x10] sm:$0xff]
        %v577 = vld [vmem:[%s573 + $0x18] sm:$0xff]
        %v578 = vpack.c.bf16 %v575, %v574
        %v579 = vpack.c.bf16 %v577, %v576
        %580 = vmatprep.subr.bf16.mxu0 0
        %581 = vmatpush1.bf16.msra.mxu0 0
        %582 = vmatprep.subr.bf16.mxu0 0
        %583 = vmatpush1.bf16.msra.mxu0 0
        %584 = vmatprep.subr.bf16.mxu0 0
        %585 = vmatpush1.bf16.msra.mxu0 0
        %586 = vmatprep.subr.bf16.mxu0 0
        %587 = vmatpush1.bf16.msra.mxu0 0
        %588 = vmatprep.subr.bf16.mxu0 0
        %589 = vmatpush1.bf16.msra.mxu0 0
        %590 = vmatprep.subr.bf16.mxu0 0
        %591 = vmatpush1.bf16.msra.mxu0 0
        %592 = vmatprep.subr.bf16.mxu0 0
        %593 = vmatpush1.bf16.msra.mxu0 %v579
        %594 = vmatprep.subr.bf16.mxu0 0
        %595 = vmatpush1.bf16.msra.mxu0 %v578
        %596 = vmatprep.subr.bf16.mxu0 0
        %597 = vmatpush2.bf16.msra.mxu0 0
        %598 = vmatprep.subr.bf16.mxu0 0
        %599 = vmatpush2.bf16.msra.mxu0 0
        %600 = vmatprep.subr.bf16.mxu0 0
        %601 = vmatpush2.bf16.msra.mxu0 0
        %602 = vmatprep.subr.bf16.mxu0 0
        %603 = vmatpush2.bf16.msra.mxu0 0
        %604 = vmatprep.subr.bf16.mxu0 0
        %605 = vmatpush2.bf16.msra.mxu0 0
        %606 = vmatprep.subr.bf16.mxu0 0
        %607 = vmatpush2.bf16.msra.mxu0 0
        %608 = vmatprep.subr.bf16.mxu0 0
        %609 = vmatpush2.bf16.msra.mxu0 0
        %610 = vmatprep.subr.bf16.mxu0 0
        %611 = vmatpush2.bf16.msra.mxu0 0
        %612 = vmatprep.mubr.bf16.mxu0 0
        %613 = vmatmul.mubr.bf16.gmra.mxu0 %v320
        %v614 = vpop.f32.mrf.mxu0
        %v615 = vadd.f32 0.0, %v614
        %v616 = vpop.f32.mrf.mxu0
        %v617 = vpop.f32.mrf.mxu0
        %v618 = vadd.f32 0.0, %v617
        %v619 = vpop.f32.mrf.mxu0
        %620 = vmatprep.mubr.bf16.mxu0 0
        %621 = vmatmul.mubr.bf16.gmra.mxu0 %v323
        %v622 = vpop.f32.mrf.mxu0
        %v623 = vadd.f32 0.0, %v622
        %v624 = vpop.f32.mrf.mxu0
        %v625 = vpop.f32.mrf.mxu0
        %v626 = vadd.f32 0.0, %v625
        %v627 = vpop.f32.mrf.mxu0
        %628 = vmatprep.mubr.bf16.mxu0 0
        %629 = vmatmul.mubr.bf16.gmra.mxu0 %v326
        %v630 = vpop.f32.mrf.mxu0
        %v631 = vadd.f32 0.0, %v630
        %v632 = vpop.f32.mrf.mxu0
        %v633 = vpop.f32.mrf.mxu0
        %v634 = vpop.f32.mrf.mxu0
        %635 = vdwg.mxu0
        %s636 = scalar_lea.vmem %s287, 160
        %v637 = vld [vmem:[%s636] sm:$0xff]
        %v638 = vld [vmem:[%s636 + $0x8] sm:$0xff]
        %v639 = vld [vmem:[%s636 + $0x10] sm:$0xff]
        %v640 = vld [vmem:[%s636 + $0x18] sm:$0xff]
        %v641 = vpack.c.bf16 %v638, %v637
        %v642 = vpack.c.bf16 %v640, %v639
        %643 = vmatprep.subr.bf16.mxu0 0
        %644 = vmatpush1.bf16.msra.mxu0 0
        %645 = vmatprep.subr.bf16.mxu0 0
        %646 = vmatpush1.bf16.msra.mxu0 0
        %647 = vmatprep.subr.bf16.mxu0 0
        %648 = vmatpush1.bf16.msra.mxu0 0
        %649 = vmatprep.subr.bf16.mxu0 0
        %650 = vmatpush1.bf16.msra.mxu0 0
        %651 = vmatprep.subr.bf16.mxu0 0
        %652 = vmatpush1.bf16.msra.mxu0 0
        %653 = vmatprep.subr.bf16.mxu0 0
        %654 = vmatpush1.bf16.msra.mxu0 0
        %655 = vmatprep.subr.bf16.mxu0 0
        %656 = vmatpush1.bf16.msra.mxu0 %v642
        %657 = vmatprep.subr.bf16.mxu0 0
        %658 = vmatpush1.bf16.msra.mxu0 %v641
        %659 = vmatprep.subr.bf16.mxu0 0
        %660 = vmatpush2.bf16.msra.mxu0 0
        %661 = vmatprep.subr.bf16.mxu0 0
        %662 = vmatpush2.bf16.msra.mxu0 0
        %663 = vmatprep.subr.bf16.mxu0 0
        %664 = vmatpush2.bf16.msra.mxu0 0
        %665 = vmatprep.subr.bf16.mxu0 0
        %666 = vmatpush2.bf16.msra.mxu0 0
        %667 = vmatprep.subr.bf16.mxu0 0
        %668 = vmatpush2.bf16.msra.mxu0 0
        %669 = vmatprep.subr.bf16.mxu0 0
        %670 = vmatpush2.bf16.msra.mxu0 0
        %671 = vmatprep.subr.bf16.mxu0 0
        %672 = vmatpush2.bf16.msra.mxu0 0
        %673 = vmatprep.subr.bf16.mxu0 0
        %674 = vmatpush2.bf16.msra.mxu0 0
        %675 = vmatprep.mubr.bf16.mxu0 0
        %676 = vmatmul.mubr.bf16.gmra.mxu0 %v320
        %v677 = vpop.f32.mrf.mxu0
        %v678 = vadd.f32 0.0, %v677
        %v679 = vpop.f32.mrf.mxu0
        %v680 = vpop.f32.mrf.mxu0
        %v681 = vadd.f32 0.0, %v680
        %v682 = vpop.f32.mrf.mxu0
        %683 = vmatprep.mubr.bf16.mxu0 0
        %684 = vmatmul.mubr.bf16.gmra.mxu0 %v323
        %v685 = vpop.f32.mrf.mxu0
        %v686 = vadd.f32 0.0, %v685
        %v687 = vpop.f32.mrf.mxu0
        %v688 = vpop.f32.mrf.mxu0
        %v689 = vadd.f32 0.0, %v688
        %v690 = vpop.f32.mrf.mxu0
        %691 = vmatprep.mubr.bf16.mxu0 0
        %692 = vmatmul.mubr.bf16.gmra.mxu0 %v326
        %v693 = vpop.f32.mrf.mxu0
        %v694 = vadd.f32 0.0, %v693
        %v695 = vpop.f32.mrf.mxu0
        %v696 = vpop.f32.mrf.mxu0
        %v697 = vpop.f32.mrf.mxu0
        %698 = vdwg.mxu0
        %s699 = scalar_lea.vmem %s287, 192
        %v700 = vld [vmem:[%s699] sm:$0xff]
        %v701 = vld [vmem:[%s699 + $0x8] sm:$0xff]
        %v702 = vld [vmem:[%s699 + $0x10] sm:$0xff]
        %v703 = vld [vmem:[%s699 + $0x18] sm:$0xff]
        %v704 = vpack.c.bf16 %v701, %v700
        %v705 = vpack.c.bf16 %v703, %v702
        %706 = vmatprep.subr.bf16.mxu0 0
        %707 = vmatpush1.bf16.msra.mxu0 0
        %708 = vmatprep.subr.bf16.mxu0 0
        %709 = vmatpush1.bf16.msra.mxu0 0
        %710 = vmatprep.subr.bf16.mxu0 0
        %711 = vmatpush1.bf16.msra.mxu0 0
        %712 = vmatprep.subr.bf16.mxu0 0
        %713 = vmatpush1.bf16.msra.mxu0 0
        %714 = vmatprep.subr.bf16.mxu0 0
        %715 = vmatpush1.bf16.msra.mxu0 0
        %716 = vmatprep.subr.bf16.mxu0 0
        %717 = vmatpush1.bf16.msra.mxu0 0
        %718 = vmatprep.subr.bf16.mxu0 0
        %719 = vmatpush1.bf16.msra.mxu0 %v705
        %720 = vmatprep.subr.bf16.mxu0 0
        %721 = vmatpush1.bf16.msra.mxu0 %v704
        %722 = vmatprep.subr.bf16.mxu0 0
        %723 = vmatpush2.bf16.msra.mxu0 0
        %724 = vmatprep.subr.bf16.mxu0 0
        %725 = vmatpush2.bf16.msra.mxu0 0
        %726 = vmatprep.subr.bf16.mxu0 0
        %727 = vmatpush2.bf16.msra.mxu0 0
        %728 = vmatprep.subr.bf16.mxu0 0
        %729 = vmatpush2.bf16.msra.mxu0 0
        %730 = vmatprep.subr.bf16.mxu0 0
        %731 = vmatpush2.bf16.msra.mxu0 0
        %732 = vmatprep.subr.bf16.mxu0 0
        %733 = vmatpush2.bf16.msra.mxu0 0
        %734 = vmatprep.subr.bf16.mxu0 0
        %735 = vmatpush2.bf16.msra.mxu0 0
        %736 = vmatprep.subr.bf16.mxu0 0
        %737 = vmatpush2.bf16.msra.mxu0 0
        %738 = vmatprep.mubr.bf16.mxu0 0
        %739 = vmatmul.mubr.bf16.gmra.mxu0 %v320
        %v740 = vpop.f32.mrf.mxu0
        %v741 = vadd.f32 0.0, %v740
        %v742 = vpop.f32.mrf.mxu0
        %v743 = vpop.f32.mrf.mxu0
        %v744 = vadd.f32 0.0, %v743
        %v745 = vpop.f32.mrf.mxu0
        %746 = vmatprep.mubr.bf16.mxu0 0
        %747 = vmatmul.mubr.bf16.gmra.mxu0 %v323
        %v748 = vpop.f32.mrf.mxu0
        %v749 = vadd.f32 0.0, %v748
        %v750 = vpop.f32.mrf.mxu0
        %v751 = vpop.f32.mrf.mxu0
        %v752 = vadd.f32 0.0, %v751
        %v753 = vpop.f32.mrf.mxu0
        %754 = vmatprep.mubr.bf16.mxu0 0
        %755 = vmatmul.mubr.bf16.gmra.mxu0 %v326
        %v756 = vpop.f32.mrf.mxu0
        %v757 = vadd.f32 0.0, %v756
        %v758 = vpop.f32.mrf.mxu0
        %v759 = vpop.f32.mrf.mxu0
        %v760 = vpop.f32.mrf.mxu0
        %761 = vdwg.mxu0
        %s762 = scalar_lea.vmem %s287, 224
        %v763 = vld [vmem:[%s762] sm:$0xff]
        %v764 = vld [vmem:[%s762 + $0x8] sm:$0xff]
        %v765 = vld [vmem:[%s762 + $0x10] sm:$0xff]
        %v766 = vld [vmem:[%s762 + $0x18] sm:$0xff]
        %v767 = vpack.c.bf16 %v764, %v763
        %v768 = vpack.c.bf16 %v766, %v765
        %769 = vmatprep.subr.bf16.mxu0 0
        %770 = vmatpush1.bf16.msra.mxu0 0
        %771 = vmatprep.subr.bf16.mxu0 0
        %772 = vmatpush1.bf16.msra.mxu0 0
        %773 = vmatprep.subr.bf16.mxu0 0
        %774 = vmatpush1.bf16.msra.mxu0 0
        %775 = vmatprep.subr.bf16.mxu0 0
        %776 = vmatpush1.bf16.msra.mxu0 0
        %777 = vmatprep.subr.bf16.mxu0 0
        %778 = vmatpush1.bf16.msra.mxu0 0
        %779 = vmatprep.subr.bf16.mxu0 0
        %780 = vmatpush1.bf16.msra.mxu0 0
        %781 = vmatprep.subr.bf16.mxu0 0
        %782 = vmatpush1.bf16.msra.mxu0 %v768
        %783 = vmatprep.subr.bf16.mxu0 0
        %784 = vmatpush1.bf16.msra.mxu0 %v767
        %785 = vmatprep.subr.bf16.mxu0 0
        %786 = vmatpush2.bf16.msra.mxu0 0
        %787 = vmatprep.subr.bf16.mxu0 0
        %788 = vmatpush2.bf16.msra.mxu0 0
        %789 = vmatprep.subr.bf16.mxu0 0
        %790 = vmatpush2.bf16.msra.mxu0 0
        %791 = vmatprep.subr.bf16.mxu0 0
        %792 = vmatpush2.bf16.msra.mxu0 0
        %793 = vmatprep.subr.bf16.mxu0 0
        %794 = vmatpush2.bf16.msra.mxu0 0
        %795 = vmatprep.subr.bf16.mxu0 0
        %796 = vmatpush2.bf16.msra.mxu0 0
        %797 = vmatprep.subr.bf16.mxu0 0
        %798 = vmatpush2.bf16.msra.mxu0 0
        %799 = vmatprep.subr.bf16.mxu0 0
        %800 = vmatpush2.bf16.msra.mxu0 0
        %801 = vmatprep.mubr.bf16.mxu0 0
        %802 = vmatmul.mubr.bf16.gmra.mxu0 %v320
        %v803 = vpop.f32.mrf.mxu0
        %v804 = vadd.f32 0.0, %v803
        %v805 = vpop.f32.mrf.mxu0
        %v806 = vpop.f32.mrf.mxu0
        %v807 = vadd.f32 0.0, %v806
        %v808 = vpop.f32.mrf.mxu0
        %809 = vmatprep.mubr.bf16.mxu0 0
        %810 = vmatmul.mubr.bf16.gmra.mxu0 %v323
        %v811 = vpop.f32.mrf.mxu0
        %v812 = vadd.f32 0.0, %v811
        %v813 = vpop.f32.mrf.mxu0
        %v814 = vpop.f32.mrf.mxu0
        %v815 = vadd.f32 0.0, %v814
        %v816 = vpop.f32.mrf.mxu0
        %817 = vmatprep.mubr.bf16.mxu0 0
        %818 = vmatmul.mubr.bf16.gmra.mxu0 %v326
        %v819 = vpop.f32.mrf.mxu0
        %v820 = vadd.f32 0.0, %v819
        %v821 = vpop.f32.mrf.mxu0
        %v822 = vpop.f32.mrf.mxu0
        %v823 = vpop.f32.mrf.mxu0
        %824 = vdwg.mxu0
        %v825 = vld [vmem:[%s2] sm:$0xff]
        %v826 = vld [vmem:[%s2 + $0x8] sm:$0xff]
        %v827 = vld [vmem:[%s2 + $0x10] sm:$0xff]
        %v828 = vld [vmem:[%s2 + $0x18] sm:$0xff]
        %v829 = vld [vmem:[%s2 + $0x20] sm:$0xff]
        %v830 = vadd.f32 %v363, %v825
        %v831 = vadd.f32 %v366, %v826
        %v832 = vadd.f32 %v371, %v827
        %v833 = vadd.f32 %v374, %v828
        %v834 = vadd.f32 %v379, %v829
        %v835 = vadd.f32 %v426, %v825
        %v836 = vadd.f32 %v429, %v826
        %v837 = vadd.f32 %v434, %v827
        %v838 = vadd.f32 %v437, %v828
        %v839 = vadd.f32 %v442, %v829
        %v840 = vadd.f32 %v489, %v825
        %v841 = vadd.f32 %v492, %v826
        %v842 = vadd.f32 %v497, %v827
        %v843 = vadd.f32 %v500, %v828
        %v844 = vadd.f32 %v505, %v829
        %v845 = vadd.f32 %v552, %v825
        %v846 = vadd.f32 %v555, %v826
        %v847 = vadd.f32 %v560, %v827
        %v848 = vadd.f32 %v563, %v828
        %v849 = vadd.f32 %v568, %v829
        %v850 = vadd.f32 %v615, %v825
        %v851 = vadd.f32 %v618, %v826
        %v852 = vadd.f32 %v623, %v827
        %v853 = vadd.f32 %v626, %v828
        %v854 = vadd.f32 %v631, %v829
        %v855 = vadd.f32 %v678, %v825
        %v856 = vadd.f32 %v681, %v826
        %v857 = vadd.f32 %v686, %v827
        %v858 = vadd.f32 %v689, %v828
        %v859 = vadd.f32 %v694, %v829
        %v860 = vadd.f32 %v741, %v825
        %v861 = vadd.f32 %v744, %v826
        %v862 = vadd.f32 %v749, %v827
        %v863 = vadd.f32 %v752, %v828
        %v864 = vadd.f32 %v757, %v829
        %v865 = vadd.f32 %v804, %v825
        %v866 = vadd.f32 %v807, %v826
        %v867 = vadd.f32 %v812, %v827
        %v868 = vadd.f32 %v815, %v828
        %v869 = vadd.f32 %v820, %v829
        %v870 = vld [vmem:[%s3] sm:$0xf]
        %vm871 = vcmask 125952
        %v872 = vsel %vm871, %v830, -inf
        %873 = vmax.xlane.f32.xlu0 %v872
        %v874 = vpop.xlane.xlu0 %873
        %v875 = vsel %vm871, %v835, -inf
        %876 = vmax.xlane.f32.xlu0 %v875
        %v877 = vpop.xlane.xlu0 %876
        %v878 = vsel %vm871, %v840, -inf
        %879 = vmax.xlane.f32.xlu0 %v878
        %v880 = vpop.xlane.xlu0 %879
        %v881 = vsel %vm871, %v845, -inf
        %882 = vmax.xlane.f32.xlu0 %v881
        %v883 = vpop.xlane.xlu0 %882
        %v884 = vsel %vm871, %v850, -inf
        %885 = vmax.xlane.f32.xlu0 %v884
        %v886 = vpop.xlane.xlu0 %885
        %v887 = vsel %vm871, %v855, -inf
        %888 = vmax.xlane.f32.xlu0 %v887
        %v889 = vpop.xlane.xlu0 %888
        %v890 = vsel %vm871, %v860, -inf
        %891 = vmax.xlane.f32.xlu0 %v890
        %v892 = vpop.xlane.xlu0 %891
        %v893 = vsel %vm871, %v865, -inf
        %894 = vmax.xlane.f32.xlu0 %v893
        %v895 = vpop.xlane.xlu0 %894
        %v896 = vmax.f32 %v874, %v870
        %v897 = vmax.f32 %v877, %v870
        %v898 = vmax.f32 %v880, %v870
        %v899 = vmax.f32 %v883, %v870
        %v900 = vmax.f32 %v886, %v870
        %v901 = vmax.f32 %v889, %v870
        %v902 = vmax.f32 %v892, %v870
        %v903 = vmax.f32 %v895, %v870
        %905 = vset.pattern.permute.xlu0 0
        %906 = vperm.xlu0 %905, %v896
        %v907 = vpop.permute.xlu0 %906
        %910 = vset.pattern.permute.xlu0 0
        %911 = vperm.xlu0 %910, %v897
        %v912 = vpop.permute.xlu0 %911
        %915 = vset.pattern.permute.xlu0 0
        %916 = vperm.xlu0 %915, %v898
        %v917 = vpop.permute.xlu0 %916
        %920 = vset.pattern.permute.xlu0 0
        %921 = vperm.xlu0 %920, %v899
        %v922 = vpop.permute.xlu0 %921
        %925 = vset.pattern.permute.xlu0 0
        %926 = vperm.xlu0 %925, %v900
        %v927 = vpop.permute.xlu0 %926
        %930 = vset.pattern.permute.xlu0 0
        %931 = vperm.xlu0 %930, %v901
        %v932 = vpop.permute.xlu0 %931
        %935 = vset.pattern.permute.xlu0 0
        %936 = vperm.xlu0 %935, %v902
        %v937 = vpop.permute.xlu0 %936
        %940 = vset.pattern.permute.xlu0 0
        %941 = vperm.xlu0 %940, %v903
        %v942 = vpop.permute.xlu0 %941
        %v944 = vsub.f32 %v830, %v907
        %v945 = vsub.f32 %v835, %v912
        %v946 = vsub.f32 %v840, %v917
        %v947 = vsub.f32 %v845, %v922
        %v948 = vsub.f32 %v850, %v927
        %v949 = vsub.f32 %v855, %v932
        %v950 = vsub.f32 %v860, %v937
        %v951 = vsub.f32 %v865, %v942
        %v952 = vmul.f32 %v944, 1.442695
        %v953 = vpow.pop %v952
        %v954 = vmul.f32 %v945, 1.442695
        %v955 = vpow.pop %v954
        %v956 = vmul.f32 %v946, 1.442695
        %v957 = vpow.pop %v956
        %v958 = vmul.f32 %v947, 1.442695
        %v959 = vpow.pop %v958
        %v960 = vmul.f32 %v948, 1.442695
        %v961 = vpow.pop %v960
        %v962 = vmul.f32 %v949, 1.442695
        %v963 = vpow.pop %v962
        %v964 = vmul.f32 %v950, 1.442695
        %v965 = vpow.pop %v964
        %v966 = vmul.f32 %v951, 1.442695
        %v967 = vpow.pop %v966
        %v968 = vsub.f32 %v870, %v896
        %v969 = vsub.f32 %v870, %v897
        %v970 = vsub.f32 %v870, %v898
        %v971 = vsub.f32 %v870, %v899
        %v972 = vsub.f32 %v870, %v900
        %v973 = vsub.f32 %v870, %v901
        %v974 = vsub.f32 %v870, %v902
        %v975 = vsub.f32 %v870, %v903
        %v976 = vmul.f32 %v968, 1.442695
        %v977 = vpow.pop %v976
        %v978 = vmul.f32 %v969, 1.442695
        %v979 = vpow.pop %v978
        %v980 = vmul.f32 %v970, 1.442695
        %v981 = vpow.pop %v980
        %v982 = vmul.f32 %v971, 1.442695
        %v983 = vpow.pop %v982
        %v984 = vmul.f32 %v972, 1.442695
        %v985 = vpow.pop %v984
        %v986 = vmul.f32 %v973, 1.442695
        %v987 = vpow.pop %v986
        %v988 = vmul.f32 %v974, 1.442695
        %v989 = vpow.pop %v988
        %v990 = vmul.f32 %v975, 1.442695
        %v991 = vpow.pop %v990
        %v992 = vsel %vm871, %v953, 0.0
        %993 = vadd.xlane.f32.xlu0 %v992
        %v994 = vpop.xlane.xlu0 %993
        %v995 = vsel %vm871, %v955, 0.0
        %996 = vadd.xlane.f32.xlu0 %v995
        %v997 = vpop.xlane.xlu0 %996
        %v998 = vsel %vm871, %v957, 0.0
        %999 = vadd.xlane.f32.xlu0 %v998
        %v1000 = vpop.xlane.xlu0 %999
        %v1001 = vsel %vm871, %v959, 0.0
        %1002 = vadd.xlane.f32.xlu0 %v1001
        %v1003 = vpop.xlane.xlu0 %1002
        %v1004 = vsel %vm871, %v961, 0.0
        %1005 = vadd.xlane.f32.xlu0 %v1004
        %v1006 = vpop.xlane.xlu0 %1005
        %v1007 = vsel %vm871, %v963, 0.0
        %1008 = vadd.xlane.f32.xlu0 %v1007
        %v1009 = vpop.xlane.xlu0 %1008
        %v1010 = vsel %vm871, %v965, 0.0
        %1011 = vadd.xlane.f32.xlu0 %v1010
        %v1012 = vpop.xlane.xlu0 %1011
        %v1013 = vsel %vm871, %v967, 0.0
        %1014 = vadd.xlane.f32.xlu0 %v1013
        %v1015 = vpop.xlane.xlu0 %1014
        %v1016 = vadd.f32 %v994, %v977
        %v1017 = vadd.f32 %v997, %v979
        %v1018 = vadd.f32 %v1000, %v981
        %v1019 = vadd.f32 %v1003, %v983
        %v1020 = vadd.f32 %v1006, %v985
        %v1021 = vadd.f32 %v1009, %v987
        %v1022 = vadd.f32 %v1012, %v989
        %v1023 = vadd.f32 %v1015, %v991
        %v1024 = vrcp.pop %v1016
        %v1025 = vrcp.pop %v1017
        %v1026 = vrcp.pop %v1018
        %v1027 = vrcp.pop %v1019
        %v1028 = vrcp.pop %v1020
        %v1029 = vrcp.pop %v1021
        %v1030 = vrcp.pop %v1022
        %v1031 = vrcp.pop %v1023
        %1033 = vset.pattern.permute.xlu0 0
        %1034 = vperm.xlu0 %1033, %v1024
        %v1035 = vpop.permute.xlu0 %1034
        %1038 = vset.pattern.permute.xlu0 0
        %1039 = vperm.xlu0 %1038, %v1025
        %v1040 = vpop.permute.xlu0 %1039
        %1043 = vset.pattern.permute.xlu0 0
        %1044 = vperm.xlu0 %1043, %v1026
        %v1045 = vpop.permute.xlu0 %1044
        %1048 = vset.pattern.permute.xlu0 0
        %1049 = vperm.xlu0 %1048, %v1027
        %v1050 = vpop.permute.xlu0 %1049
        %1053 = vset.pattern.permute.xlu0 0
        %1054 = vperm.xlu0 %1053, %v1028
        %v1055 = vpop.permute.xlu0 %1054
        %1058 = vset.pattern.permute.xlu0 0
        %1059 = vperm.xlu0 %1058, %v1029
        %v1060 = vpop.permute.xlu0 %1059
        %1063 = vset.pattern.permute.xlu0 0
        %1064 = vperm.xlu0 %1063, %v1030
        %v1065 = vpop.permute.xlu0 %1064
        %1068 = vset.pattern.permute.xlu0 0
        %1069 = vperm.xlu0 %1068, %v1031
        %v1070 = vpop.permute.xlu0 %1069
        %v1072 = vmul.f32 %v953, %v1035
        %v1073 = vmul.f32 %v955, %v1040
        %v1074 = vmul.f32 %v957, %v1045
        %v1075 = vmul.f32 %v959, %v1050
        %v1076 = vmul.f32 %v961, %v1055
        %v1077 = vmul.f32 %v963, %v1060
        %v1078 = vmul.f32 %v965, %v1065
        %v1079 = vmul.f32 %v967, %v1070
        %v1080 = vmul.f32 %v977, %v1024
        %v1081 = vmul.f32 %v979, %v1025
        %v1082 = vmul.f32 %v981, %v1026
        %v1083 = vmul.f32 %v983, %v1027
        %v1084 = vmul.f32 %v985, %v1028
        %v1085 = vmul.f32 %v987, %v1029
        %v1086 = vmul.f32 %v989, %v1030
        %v1087 = vmul.f32 %v991, %v1031
        %v1088 = vsel %vm871, %v1072, 0.0
        %v1089 = vrot.slane %v1088, 4
        %v1090 = vadd.f32 %v1088, %v1089
        %v1091 = vrot.slane %v1090, 2
        %v1092 = vadd.f32 %v1090, %v1091
        %v1093 = vrot.slane %v1092, 1
        %v1094 = vadd.f32 %v1092, %v1093
        %v1095 = vsel %vm871, %v1073, 0.0
        %v1096 = vrot.slane %v1095, 4
        %v1097 = vadd.f32 %v1095, %v1096
        %v1098 = vrot.slane %v1097, 2
        %v1099 = vadd.f32 %v1097, %v1098
        %v1100 = vrot.slane %v1099, 1
        %v1101 = vadd.f32 %v1099, %v1100
        %v1102 = vsel %vm871, %v1074, 0.0
        %v1103 = vrot.slane %v1102, 4
        %v1104 = vadd.f32 %v1102, %v1103
        %v1105 = vrot.slane %v1104, 2
        %v1106 = vadd.f32 %v1104, %v1105
        %v1107 = vrot.slane %v1106, 1
        %v1108 = vadd.f32 %v1106, %v1107
        %v1109 = vsel %vm871, %v1075, 0.0
        %v1110 = vrot.slane %v1109, 4
        %v1111 = vadd.f32 %v1109, %v1110
        %v1112 = vrot.slane %v1111, 2
        %v1113 = vadd.f32 %v1111, %v1112
        %v1114 = vrot.slane %v1113, 1
        %v1115 = vadd.f32 %v1113, %v1114
        %v1116 = vsel %vm871, %v1076, 0.0
        %v1117 = vrot.slane %v1116, 4
        %v1118 = vadd.f32 %v1116, %v1117
        %v1119 = vrot.slane %v1118, 2
        %v1120 = vadd.f32 %v1118, %v1119
        %v1121 = vrot.slane %v1120, 1
        %v1122 = vadd.f32 %v1120, %v1121
        %v1123 = vsel %vm871, %v1077, 0.0
        %v1124 = vrot.slane %v1123, 4
        %v1125 = vadd.f32 %v1123, %v1124
        %v1126 = vrot.slane %v1125, 2
        %v1127 = vadd.f32 %v1125, %v1126
        %v1128 = vrot.slane %v1127, 1
        %v1129 = vadd.f32 %v1127, %v1128
        %v1130 = vsel %vm871, %v1078, 0.0
        %v1131 = vrot.slane %v1130, 4
        %v1132 = vadd.f32 %v1130, %v1131
        %v1133 = vrot.slane %v1132, 2
        %v1134 = vadd.f32 %v1132, %v1133
        %v1135 = vrot.slane %v1134, 1
        %v1136 = vadd.f32 %v1134, %v1135
        %v1137 = vsel %vm871, %v1079, 0.0
        %v1138 = vrot.slane %v1137, 4
        %v1139 = vadd.f32 %v1137, %v1138
        %v1140 = vrot.slane %v1139, 2
        %v1141 = vadd.f32 %v1139, %v1140
        %v1142 = vrot.slane %v1141, 1
        %v1143 = vadd.f32 %v1141, %v1142
        %v1144 = vrcp.pop 4.0
        %v1145 = vmul.f32 %v1094, %v1144
        %v1146 = vmul.f32 %v1101, %v1144
        %v1147 = vmul.f32 %v1108, %v1144
        %v1148 = vmul.f32 %v1115, %v1144
        %v1149 = vmul.f32 %v1122, %v1144
        %v1150 = vmul.f32 %v1129, %v1144
        %v1151 = vmul.f32 %v1136, %v1144
        %v1152 = vmul.f32 %v1143, %v1144
        %vm1161 = vcmask 1041409
        %v1162 = vsel %vm1161, %v1146, %v1145
        %vm1163 = vcmask 1042434
        %v1164 = vsel %vm1163, %v1147, %v1162
        %vm1165 = vcmask 1043459
        %v1166 = vsel %vm1165, %v1148, %v1164
        %vm1167 = vcmask 1044484
        %v1168 = vsel %vm1167, %v1149, %v1166
        %vm1169 = vcmask 1045509
        %v1170 = vsel %vm1169, %v1150, %v1168
        %vm1171 = vcmask 1046534
        %v1172 = vsel %vm1171, %v1151, %v1170
        %vm1173 = vcmask 1047559
        %v1174 = vsel %vm1173, %v1152, %v1172
        %vm1176 = vcmask 130048
        %v1177 = vsel %vm1176, %v1174, 0.0
        %1178 = vst [vmem:[%s292] sm:$0xff] %v1177
        %v1188 = vunpack.c.l.s4 1966171168
        %v1189 = vunpack.c.0.s8 %v1188
        %v1190 = vlaneseq
        %v1191 = vshrl.u32 %v1190, 7
        %v1192 = vsub.s32 %v1189, %v1191
        %v1193 = vrot.slane %v1072, %v1192
        %v1194 = vcombine.high %v1193, %v1193
        %v1196 = vunpack.c.l.s4 1966171168
        %v1197 = vunpack.c.0.s8 %v1196
        %v1198 = vlaneseq
        %v1199 = vshrl.u32 %v1198, 7
        %v1200 = vsub.s32 %v1197, %v1199
        %v1201 = vrot.slane %v1193, %v1200
        %v1203 = vunpack.c.l.s4 1966171168
        %v1204 = vunpack.c.0.s8 %v1203
        %v1205 = vlaneseq
        %v1206 = vshrl.u32 %v1205, 7
        %v1207 = vsub.s32 %v1204, %v1206
        %v1208 = vrot.slane %v1194, %v1207
        %v1209 = vcombine.high %v1201, %v1201
        %v1210 = vcombine.high %v1208, %v1208
        %v1212 = vunpack.c.l.s4 1966171168
        %v1213 = vunpack.c.0.s8 %v1212
        %v1214 = vlaneseq
        %v1215 = vshrl.u32 %v1214, 7
        %v1216 = vsub.s32 %v1213, %v1215
        %v1217 = vrot.slane %v1073, %v1216
        %v1218 = vcombine.high %v1217, %v1217
        %v1220 = vunpack.c.l.s4 1966171168
        %v1221 = vunpack.c.0.s8 %v1220
        %v1222 = vlaneseq
        %v1223 = vshrl.u32 %v1222, 7
        %v1224 = vsub.s32 %v1221, %v1223
        %v1225 = vrot.slane %v1217, %v1224
        %v1227 = vunpack.c.l.s4 1966171168
        %v1228 = vunpack.c.0.s8 %v1227
        %v1229 = vlaneseq
        %v1230 = vshrl.u32 %v1229, 7
        %v1231 = vsub.s32 %v1228, %v1230
        %v1232 = vrot.slane %v1218, %v1231
        %v1233 = vcombine.high %v1225, %v1225
        %v1234 = vcombine.high %v1232, %v1232
        %v1236 = vunpack.c.l.s4 1966171168
        %v1237 = vunpack.c.0.s8 %v1236
        %v1238 = vlaneseq
        %v1239 = vshrl.u32 %v1238, 7
        %v1240 = vsub.s32 %v1237, %v1239
        %v1241 = vrot.slane %v1074, %v1240
        %v1242 = vcombine.high %v1241, %v1241
        %v1244 = vunpack.c.l.s4 1966171168
        %v1245 = vunpack.c.0.s8 %v1244
        %v1246 = vlaneseq
        %v1247 = vshrl.u32 %v1246, 7
        %v1248 = vsub.s32 %v1245, %v1247
        %v1249 = vrot.slane %v1241, %v1248
        %v1251 = vunpack.c.l.s4 1966171168
        %v1252 = vunpack.c.0.s8 %v1251
        %v1253 = vlaneseq
        %v1254 = vshrl.u32 %v1253, 7
        %v1255 = vsub.s32 %v1252, %v1254
        %v1256 = vrot.slane %v1242, %v1255
        %v1257 = vcombine.high %v1249, %v1249
        %v1258 = vcombine.high %v1256, %v1256
        %v1260 = vunpack.c.l.s4 1966171168
        %v1261 = vunpack.c.0.s8 %v1260
        %v1262 = vlaneseq
        %v1263 = vshrl.u32 %v1262, 7
        %v1264 = vsub.s32 %v1261, %v1263
        %v1265 = vrot.slane %v1075, %v1264
        %v1266 = vcombine.high %v1265, %v1265
        %v1268 = vunpack.c.l.s4 1966171168
        %v1269 = vunpack.c.0.s8 %v1268
        %v1270 = vlaneseq
        %v1271 = vshrl.u32 %v1270, 7
        %v1272 = vsub.s32 %v1269, %v1271
        %v1273 = vrot.slane %v1265, %v1272
        %v1275 = vunpack.c.l.s4 1966171168
        %v1276 = vunpack.c.0.s8 %v1275
        %v1277 = vlaneseq
        %v1278 = vshrl.u32 %v1277, 7
        %v1279 = vsub.s32 %v1276, %v1278
        %v1280 = vrot.slane %v1266, %v1279
        %v1281 = vcombine.high %v1273, %v1273
        %v1282 = vcombine.high %v1280, %v1280
        %v1284 = vunpack.c.l.s4 1966171168
        %v1285 = vunpack.c.0.s8 %v1284
        %v1286 = vlaneseq
        %v1287 = vshrl.u32 %v1286, 7
        %v1288 = vsub.s32 %v1285, %v1287
        %v1289 = vrot.slane %v1076, %v1288
        %v1290 = vcombine.high %v1289, %v1289
        %v1292 = vunpack.c.l.s4 1966171168
        %v1293 = vunpack.c.0.s8 %v1292
        %v1294 = vlaneseq
        %v1295 = vshrl.u32 %v1294, 7
        %v1296 = vsub.s32 %v1293, %v1295
        %v1297 = vrot.slane %v1289, %v1296
        %v1299 = vunpack.c.l.s4 1966171168
        %v1300 = vunpack.c.0.s8 %v1299
        %v1301 = vlaneseq
        %v1302 = vshrl.u32 %v1301, 7
        %v1303 = vsub.s32 %v1300, %v1302
        %v1304 = vrot.slane %v1290, %v1303
        %v1305 = vcombine.high %v1297, %v1297
        %v1306 = vcombine.high %v1304, %v1304
        %v1308 = vunpack.c.l.s4 1966171168
        %v1309 = vunpack.c.0.s8 %v1308
        %v1310 = vlaneseq
        %v1311 = vshrl.u32 %v1310, 7
        %v1312 = vsub.s32 %v1309, %v1311
        %v1313 = vrot.slane %v1077, %v1312
        %v1314 = vcombine.high %v1313, %v1313
        %v1316 = vunpack.c.l.s4 1966171168
        %v1317 = vunpack.c.0.s8 %v1316
        %v1318 = vlaneseq
        %v1319 = vshrl.u32 %v1318, 7
        %v1320 = vsub.s32 %v1317, %v1319
        %v1321 = vrot.slane %v1313, %v1320
        %v1323 = vunpack.c.l.s4 1966171168
        %v1324 = vunpack.c.0.s8 %v1323
        %v1325 = vlaneseq
        %v1326 = vshrl.u32 %v1325, 7
        %v1327 = vsub.s32 %v1324, %v1326
        %v1328 = vrot.slane %v1314, %v1327
        %v1329 = vcombine.high %v1321, %v1321
        %v1330 = vcombine.high %v1328, %v1328
        %v1332 = vunpack.c.l.s4 1966171168
        %v1333 = vunpack.c.0.s8 %v1332
        %v1334 = vlaneseq
        %v1335 = vshrl.u32 %v1334, 7
        %v1336 = vsub.s32 %v1333, %v1335
        %v1337 = vrot.slane %v1078, %v1336
        %v1338 = vcombine.high %v1337, %v1337
        %v1340 = vunpack.c.l.s4 1966171168
        %v1341 = vunpack.c.0.s8 %v1340
        %v1342 = vlaneseq
        %v1343 = vshrl.u32 %v1342, 7
        %v1344 = vsub.s32 %v1341, %v1343
        %v1345 = vrot.slane %v1337, %v1344
        %v1347 = vunpack.c.l.s4 1966171168
        %v1348 = vunpack.c.0.s8 %v1347
        %v1349 = vlaneseq
        %v1350 = vshrl.u32 %v1349, 7
        %v1351 = vsub.s32 %v1348, %v1350
        %v1352 = vrot.slane %v1338, %v1351
        %v1353 = vcombine.high %v1345, %v1345
        %v1354 = vcombine.high %v1352, %v1352
        %v1356 = vunpack.c.l.s4 1966171168
        %v1357 = vunpack.c.0.s8 %v1356
        %v1358 = vlaneseq
        %v1359 = vshrl.u32 %v1358, 7
        %v1360 = vsub.s32 %v1357, %v1359
        %v1361 = vrot.slane %v1079, %v1360
        %v1362 = vcombine.high %v1361, %v1361
        %v1364 = vunpack.c.l.s4 1966171168
        %v1365 = vunpack.c.0.s8 %v1364
        %v1366 = vlaneseq
        %v1367 = vshrl.u32 %v1366, 7
        %v1368 = vsub.s32 %v1365, %v1367
        %v1369 = vrot.slane %v1361, %v1368
        %v1371 = vunpack.c.l.s4 1966171168
        %v1372 = vunpack.c.0.s8 %v1371
        %v1373 = vlaneseq
        %v1374 = vshrl.u32 %v1373, 7
        %v1375 = vsub.s32 %v1372, %v1374
        %v1376 = vrot.slane %v1362, %v1375
        %v1377 = vcombine.high %v1369, %v1369
        %v1378 = vcombine.high %v1376, %v1376
        %v1379 = vlaneseq
        %v1380 = vshrl.u32 %v1379, 7
        %v1381 = vsub.s32 0, %v1380
        %v1382 = vrot.slane %v1201, %v1381
        %v1383 = vlaneseq
        %v1384 = vshrl.u32 %v1383, 7
        %v1385 = vsub.s32 0, %v1384
        %v1386 = vrot.slane %v1208, %v1385
        %v1387 = vlaneseq
        %v1388 = vshrl.u32 %v1387, 7
        %v1389 = vsub.s32 0, %v1388
        %v1390 = vrot.slane %v1209, %v1389
        %v1391 = vlaneseq
        %v1392 = vshrl.u32 %v1391, 7
        %v1393 = vsub.s32 0, %v1392
        %v1394 = vrot.slane %v1210, %v1393
        %v1395 = vlaneseq
        %v1396 = vshrl.u32 %v1395, 7
        %v1397 = vsub.s32 0, %v1396
        %v1398 = vrot.slane %v1225, %v1397
        %v1399 = vlaneseq
        %v1400 = vshrl.u32 %v1399, 7
        %v1401 = vsub.s32 0, %v1400
        %v1402 = vrot.slane %v1232, %v1401
        %v1403 = vlaneseq
        %v1404 = vshrl.u32 %v1403, 7
        %v1405 = vsub.s32 0, %v1404
        %v1406 = vrot.slane %v1233, %v1405
        %v1407 = vlaneseq
        %v1408 = vshrl.u32 %v1407, 7
        %v1409 = vsub.s32 0, %v1408
        %v1410 = vrot.slane %v1234, %v1409
        %v1411 = vlaneseq
        %v1412 = vshrl.u32 %v1411, 7
        %v1413 = vsub.s32 0, %v1412
        %v1414 = vrot.slane %v1249, %v1413
        %v1415 = vlaneseq
        %v1416 = vshrl.u32 %v1415, 7
        %v1417 = vsub.s32 0, %v1416
        %v1418 = vrot.slane %v1256, %v1417
        %v1419 = vlaneseq
        %v1420 = vshrl.u32 %v1419, 7
        %v1421 = vsub.s32 0, %v1420
        %v1422 = vrot.slane %v1257, %v1421
        %v1423 = vlaneseq
        %v1424 = vshrl.u32 %v1423, 7
        %v1425 = vsub.s32 0, %v1424
        %v1426 = vrot.slane %v1258, %v1425
        %v1427 = vlaneseq
        %v1428 = vshrl.u32 %v1427, 7
        %v1429 = vsub.s32 0, %v1428
        %v1430 = vrot.slane %v1273, %v1429
        %v1431 = vlaneseq
        %v1432 = vshrl.u32 %v1431, 7
        %v1433 = vsub.s32 0, %v1432
        %v1434 = vrot.slane %v1280, %v1433
        %v1435 = vlaneseq
        %v1436 = vshrl.u32 %v1435, 7
        %v1437 = vsub.s32 0, %v1436
        %v1438 = vrot.slane %v1281, %v1437
        %v1439 = vlaneseq
        %v1440 = vshrl.u32 %v1439, 7
        %v1441 = vsub.s32 0, %v1440
        %v1442 = vrot.slane %v1282, %v1441
        %v1443 = vlaneseq
        %v1444 = vshrl.u32 %v1443, 7
        %v1445 = vsub.s32 0, %v1444
        %v1446 = vrot.slane %v1297, %v1445
        %v1447 = vlaneseq
        %v1448 = vshrl.u32 %v1447, 7
        %v1449 = vsub.s32 0, %v1448
        %v1450 = vrot.slane %v1304, %v1449
        %v1451 = vlaneseq
        %v1452 = vshrl.u32 %v1451, 7
        %v1453 = vsub.s32 0, %v1452
        %v1454 = vrot.slane %v1305, %v1453
        %v1455 = vlaneseq
        %v1456 = vshrl.u32 %v1455, 7
        %v1457 = vsub.s32 0, %v1456
        %v1458 = vrot.slane %v1306, %v1457
        %v1459 = vlaneseq
        %v1460 = vshrl.u32 %v1459, 7
        %v1461 = vsub.s32 0, %v1460
        %v1462 = vrot.slane %v1321, %v1461
        %v1463 = vlaneseq
        %v1464 = vshrl.u32 %v1463, 7
        %v1465 = vsub.s32 0, %v1464
        %v1466 = vrot.slane %v1328, %v1465
        %v1467 = vlaneseq
        %v1468 = vshrl.u32 %v1467, 7
        %v1469 = vsub.s32 0, %v1468
        %v1470 = vrot.slane %v1329, %v1469
        %v1471 = vlaneseq
        %v1472 = vshrl.u32 %v1471, 7
        %v1473 = vsub.s32 0, %v1472
        %v1474 = vrot.slane %v1330, %v1473
        %v1475 = vlaneseq
        %v1476 = vshrl.u32 %v1475, 7
        %v1477 = vsub.s32 0, %v1476
        %v1478 = vrot.slane %v1345, %v1477
        %v1479 = vlaneseq
        %v1480 = vshrl.u32 %v1479, 7
        %v1481 = vsub.s32 0, %v1480
        %v1482 = vrot.slane %v1352, %v1481
        %v1483 = vlaneseq
        %v1484 = vshrl.u32 %v1483, 7
        %v1485 = vsub.s32 0, %v1484
        %v1486 = vrot.slane %v1353, %v1485
        %v1487 = vlaneseq
        %v1488 = vshrl.u32 %v1487, 7
        %v1489 = vsub.s32 0, %v1488
        %v1490 = vrot.slane %v1354, %v1489
        %v1491 = vlaneseq
        %v1492 = vshrl.u32 %v1491, 7
        %v1493 = vsub.s32 0, %v1492
        %v1494 = vrot.slane %v1369, %v1493
        %v1495 = vlaneseq
        %v1496 = vshrl.u32 %v1495, 7
        %v1497 = vsub.s32 0, %v1496
        %v1498 = vrot.slane %v1376, %v1497
        %v1499 = vlaneseq
        %v1500 = vshrl.u32 %v1499, 7
        %v1501 = vsub.s32 0, %v1500
        %v1502 = vrot.slane %v1377, %v1501
        %v1503 = vlaneseq
        %v1504 = vshrl.u32 %v1503, 7
        %v1505 = vsub.s32 0, %v1504
        %v1506 = vrot.slane %v1378, %v1505
        %v1539 = vmul.f32 %v1382, %v831
        %v1540 = vmul.f32 %v1386, %v832
        %v1541 = vmul.f32 %v1390, %v833
        %v1542 = vmul.f32 %v1394, %v834
        %v1543 = vmul.f32 %v1398, %v836
        %v1544 = vmul.f32 %v1402, %v837
        %v1545 = vmul.f32 %v1406, %v838
        %v1546 = vmul.f32 %v1410, %v839
        %v1547 = vmul.f32 %v1414, %v841
        %v1548 = vmul.f32 %v1418, %v842
        %v1549 = vmul.f32 %v1422, %v843
        %v1550 = vmul.f32 %v1426, %v844
        %v1551 = vmul.f32 %v1430, %v846
        %v1552 = vmul.f32 %v1434, %v847
        %v1553 = vmul.f32 %v1438, %v848
        %v1554 = vmul.f32 %v1442, %v849
        %v1555 = vmul.f32 %v1446, %v851
        %v1556 = vmul.f32 %v1450, %v852
        %v1557 = vmul.f32 %v1454, %v853
        %v1558 = vmul.f32 %v1458, %v854
        %v1559 = vmul.f32 %v1462, %v856
        %v1560 = vmul.f32 %v1466, %v857
        %v1561 = vmul.f32 %v1470, %v858
        %v1562 = vmul.f32 %v1474, %v859
        %v1563 = vmul.f32 %v1478, %v861
        %v1564 = vmul.f32 %v1482, %v862
        %v1565 = vmul.f32 %v1486, %v863
        %v1566 = vmul.f32 %v1490, %v864
        %v1567 = vmul.f32 %v1494, %v866
        %v1568 = vmul.f32 %v1498, %v867
        %v1569 = vmul.f32 %v1502, %v868
        %v1570 = vmul.f32 %v1506, %v869
        %v1571 = vsel %vm1176, %v1539, 0.0
        %1572 = vadd.xlane.f32.xlu0 %v1571
        %v1573 = vpop.xlane.xlu0 %1572
        %v1574 = vsel %vm1176, %v1540, 0.0
        %1575 = vadd.xlane.f32.xlu0 %v1574
        %v1576 = vpop.xlane.xlu0 %1575
        %v1577 = vsel %vm1176, %v1541, 0.0
        %1578 = vadd.xlane.f32.xlu0 %v1577
        %v1579 = vpop.xlane.xlu0 %1578
        %v1580 = vsel %vm1176, %v1542, 0.0
        %1581 = vadd.xlane.f32.xlu0 %v1580
        %v1582 = vpop.xlane.xlu0 %1581
        %v1583 = vsel %vm1176, %v1543, 0.0
        %1584 = vadd.xlane.f32.xlu0 %v1583
        %v1585 = vpop.xlane.xlu0 %1584
        %v1586 = vsel %vm1176, %v1544, 0.0
        %1587 = vadd.xlane.f32.xlu0 %v1586
        %v1588 = vpop.xlane.xlu0 %1587
        %v1589 = vsel %vm1176, %v1545, 0.0
        %1590 = vadd.xlane.f32.xlu0 %v1589
        %v1591 = vpop.xlane.xlu0 %1590
        %v1592 = vsel %vm1176, %v1546, 0.0
        %1593 = vadd.xlane.f32.xlu0 %v1592
        %v1594 = vpop.xlane.xlu0 %1593
        %v1595 = vsel %vm1176, %v1547, 0.0
        %1596 = vadd.xlane.f32.xlu0 %v1595
        %v1597 = vpop.xlane.xlu0 %1596
        %v1598 = vsel %vm1176, %v1548, 0.0
        %1599 = vadd.xlane.f32.xlu0 %v1598
        %v1600 = vpop.xlane.xlu0 %1599
        %v1601 = vsel %vm1176, %v1549, 0.0
        %1602 = vadd.xlane.f32.xlu0 %v1601
        %v1603 = vpop.xlane.xlu0 %1602
        %v1604 = vsel %vm1176, %v1550, 0.0
        %1605 = vadd.xlane.f32.xlu0 %v1604
        %v1606 = vpop.xlane.xlu0 %1605
        %v1607 = vsel %vm1176, %v1551, 0.0
        %1608 = vadd.xlane.f32.xlu0 %v1607
        %v1609 = vpop.xlane.xlu0 %1608
        %v1610 = vsel %vm1176, %v1552, 0.0
        %1611 = vadd.xlane.f32.xlu0 %v1610
        %v1612 = vpop.xlane.xlu0 %1611
        %v1613 = vsel %vm1176, %v1553, 0.0
        %1614 = vadd.xlane.f32.xlu0 %v1613
        %v1615 = vpop.xlane.xlu0 %1614
        %v1616 = vsel %vm1176, %v1554, 0.0
        %1617 = vadd.xlane.f32.xlu0 %v1616
        %v1618 = vpop.xlane.xlu0 %1617
        %v1619 = vsel %vm1176, %v1555, 0.0
        %1620 = vadd.xlane.f32.xlu0 %v1619
        %v1621 = vpop.xlane.xlu0 %1620
        %v1622 = vsel %vm1176, %v1556, 0.0
        %1623 = vadd.xlane.f32.xlu0 %v1622
        %v1624 = vpop.xlane.xlu0 %1623
        %v1625 = vsel %vm1176, %v1557, 0.0
        %1626 = vadd.xlane.f32.xlu0 %v1625
        %v1627 = vpop.xlane.xlu0 %1626
        %v1628 = vsel %vm1176, %v1558, 0.0
        %1629 = vadd.xlane.f32.xlu0 %v1628
        %v1630 = vpop.xlane.xlu0 %1629
        %v1631 = vsel %vm1176, %v1559, 0.0
        %1632 = vadd.xlane.f32.xlu0 %v1631
        %v1633 = vpop.xlane.xlu0 %1632
        %v1634 = vsel %vm1176, %v1560, 0.0
        %1635 = vadd.xlane.f32.xlu0 %v1634
        %v1636 = vpop.xlane.xlu0 %1635
        %v1637 = vsel %vm1176, %v1561, 0.0
        %1638 = vadd.xlane.f32.xlu0 %v1637
        %v1639 = vpop.xlane.xlu0 %1638
        %v1640 = vsel %vm1176, %v1562, 0.0
        %1641 = vadd.xlane.f32.xlu0 %v1640
        %v1642 = vpop.xlane.xlu0 %1641
        %v1643 = vsel %vm1176, %v1563, 0.0
        %1644 = vadd.xlane.f32.xlu0 %v1643
        %v1645 = vpop.xlane.xlu0 %1644
        %v1646 = vsel %vm1176, %v1564, 0.0
        %1647 = vadd.xlane.f32.xlu0 %v1646
        %v1648 = vpop.xlane.xlu0 %1647
        %v1649 = vsel %vm1176, %v1565, 0.0
        %1650 = vadd.xlane.f32.xlu0 %v1649
        %v1651 = vpop.xlane.xlu0 %1650
        %v1652 = vsel %vm1176, %v1566, 0.0
        %1653 = vadd.xlane.f32.xlu0 %v1652
        %v1654 = vpop.xlane.xlu0 %1653
        %v1655 = vsel %vm1176, %v1567, 0.0
        %1656 = vadd.xlane.f32.xlu0 %v1655
        %v1657 = vpop.xlane.xlu0 %1656
        %v1658 = vsel %vm1176, %v1568, 0.0
        %1659 = vadd.xlane.f32.xlu0 %v1658
        %v1660 = vpop.xlane.xlu0 %1659
        %v1661 = vsel %vm1176, %v1569, 0.0
        %1662 = vadd.xlane.f32.xlu0 %v1661
        %v1663 = vpop.xlane.xlu0 %1662
        %v1664 = vsel %vm1176, %v1570, 0.0
        %1665 = vadd.xlane.f32.xlu0 %v1664
        %v1666 = vpop.xlane.xlu0 %1665
        %v1699 = vlaneseq
        %v1700 = vand.u32 %v1699, 127
        %v1701 = vlaneseq
        %v1702 = vshrl.u32 %v1701, 7
        %v1703 = vsub.s32 %v1700, %v1702
        %v1704 = vrot.slane %v1573, %v1703
        %v1705 = vadd.s32 %v1700, 4294967288
        %v1706 = vlaneseq
        %v1707 = vshrl.u32 %v1706, 7
        %v1708 = vsub.s32 %v1705, %v1707
        %v1709 = vrot.slane %v1576, %v1708
        %vm1710 = vcmask 130112
        %v1711 = vsel %vm1710, %v1709, %v1704
        %v1712 = vadd.s32 %v1700, 4294967280
        %v1713 = vlaneseq
        %v1714 = vshrl.u32 %v1713, 7
        %v1715 = vsub.s32 %v1712, %v1714
        %v1716 = vrot.slane %v1579, %v1715
        %vm1717 = vcmask 195712
        %v1718 = vsel %vm1717, %v1716, %v1711
        %v1719 = vadd.s32 %v1700, 4294967272
        %v1720 = vlaneseq
        %v1721 = vshrl.u32 %v1720, 7
        %v1722 = vsub.s32 %v1719, %v1721
        %v1723 = vrot.slane %v1582, %v1722
        %vm1724 = vcmask 261312
        %v1725 = vsel %vm1724, %v1723, %v1718
        %v1726 = vlaneseq
        %v1727 = vshrl.u32 %v1726, 7
        %v1728 = vsub.s32 %v1700, %v1727
        %v1729 = vrot.slane %v1585, %v1728
        %v1730 = vlaneseq
        %v1731 = vshrl.u32 %v1730, 7
        %v1732 = vsub.s32 %v1705, %v1731
        %v1733 = vrot.slane %v1588, %v1732
        %v1734 = vsel %vm1710, %v1733, %v1729
        %v1735 = vlaneseq
        %v1736 = vshrl.u32 %v1735, 7
        %v1737 = vsub.s32 %v1712, %v1736
        %v1738 = vrot.slane %v1591, %v1737
        %v1739 = vsel %vm1717, %v1738, %v1734
        %v1740 = vlaneseq
        %v1741 = vshrl.u32 %v1740, 7
        %v1742 = vsub.s32 %v1719, %v1741
        %v1743 = vrot.slane %v1594, %v1742
        %v1744 = vsel %vm1724, %v1743, %v1739
        %v1745 = vlaneseq
        %v1746 = vshrl.u32 %v1745, 7
        %v1747 = vsub.s32 %v1700, %v1746
        %v1748 = vrot.slane %v1597, %v1747
        %v1749 = vlaneseq
        %v1750 = vshrl.u32 %v1749, 7
        %v1751 = vsub.s32 %v1705, %v1750
        %v1752 = vrot.slane %v1600, %v1751
        %v1753 = vsel %vm1710, %v1752, %v1748
        %v1754 = vlaneseq
        %v1755 = vshrl.u32 %v1754, 7
        %v1756 = vsub.s32 %v1712, %v1755
        %v1757 = vrot.slane %v1603, %v1756
        %v1758 = vsel %vm1717, %v1757, %v1753
        %v1759 = vlaneseq
        %v1760 = vshrl.u32 %v1759, 7
        %v1761 = vsub.s32 %v1719, %v1760
        %v1762 = vrot.slane %v1606, %v1761
        %v1763 = vsel %vm1724, %v1762, %v1758
        %v1764 = vlaneseq
        %v1765 = vshrl.u32 %v1764, 7
        %v1766 = vsub.s32 %v1700, %v1765
        %v1767 = vrot.slane %v1609, %v1766
        %v1768 = vlaneseq
        %v1769 = vshrl.u32 %v1768, 7
        %v1770 = vsub.s32 %v1705, %v1769
        %v1771 = vrot.slane %v1612, %v1770
        %v1772 = vsel %vm1710, %v1771, %v1767
        %v1773 = vlaneseq
        %v1774 = vshrl.u32 %v1773, 7
        %v1775 = vsub.s32 %v1712, %v1774
        %v1776 = vrot.slane %v1615, %v1775
        %v1777 = vsel %vm1717, %v1776, %v1772
        %v1778 = vlaneseq
        %v1779 = vshrl.u32 %v1778, 7
        %v1780 = vsub.s32 %v1719, %v1779
        %v1781 = vrot.slane %v1618, %v1780
        %v1782 = vsel %vm1724, %v1781, %v1777
        %v1783 = vlaneseq
        %v1784 = vshrl.u32 %v1783, 7
        %v1785 = vsub.s32 %v1700, %v1784
        %v1786 = vrot.slane %v1621, %v1785
        %v1787 = vlaneseq
        %v1788 = vshrl.u32 %v1787, 7
        %v1789 = vsub.s32 %v1705, %v1788
        %v1790 = vrot.slane %v1624, %v1789
        %v1791 = vsel %vm1710, %v1790, %v1786
        %v1792 = vlaneseq
        %v1793 = vshrl.u32 %v1792, 7
        %v1794 = vsub.s32 %v1712, %v1793
        %v1795 = vrot.slane %v1627, %v1794
        %v1796 = vsel %vm1717, %v1795, %v1791
        %v1797 = vlaneseq
        %v1798 = vshrl.u32 %v1797, 7
        %v1799 = vsub.s32 %v1719, %v1798
        %v1800 = vrot.slane %v1630, %v1799
        %v1801 = vsel %vm1724, %v1800, %v1796
        %v1802 = vlaneseq
        %v1803 = vshrl.u32 %v1802, 7
        %v1804 = vsub.s32 %v1700, %v1803
        %v1805 = vrot.slane %v1633, %v1804
        %v1806 = vlaneseq
        %v1807 = vshrl.u32 %v1806, 7
        %v1808 = vsub.s32 %v1705, %v1807
        %v1809 = vrot.slane %v1636, %v1808
        %v1810 = vsel %vm1710, %v1809, %v1805
        %v1811 = vlaneseq
        %v1812 = vshrl.u32 %v1811, 7
        %v1813 = vsub.s32 %v1712, %v1812
        %v1814 = vrot.slane %v1639, %v1813
        %v1815 = vsel %vm1717, %v1814, %v1810
        %v1816 = vlaneseq
        %v1817 = vshrl.u32 %v1816, 7
        %v1818 = vsub.s32 %v1719, %v1817
        %v1819 = vrot.slane %v1642, %v1818
        %v1820 = vsel %vm1724, %v1819, %v1815
        %v1821 = vlaneseq
        %v1822 = vshrl.u32 %v1821, 7
        %v1823 = vsub.s32 %v1700, %v1822
        %v1824 = vrot.slane %v1645, %v1823
        %v1825 = vlaneseq
        %v1826 = vshrl.u32 %v1825, 7
        %v1827 = vsub.s32 %v1705, %v1826
        %v1828 = vrot.slane %v1648, %v1827
        %v1829 = vsel %vm1710, %v1828, %v1824
        %v1830 = vlaneseq
        %v1831 = vshrl.u32 %v1830, 7
        %v1832 = vsub.s32 %v1712, %v1831
        %v1833 = vrot.slane %v1651, %v1832
        %v1834 = vsel %vm1717, %v1833, %v1829
        %v1835 = vlaneseq
        %v1836 = vshrl.u32 %v1835, 7
        %v1837 = vsub.s32 %v1719, %v1836
        %v1838 = vrot.slane %v1654, %v1837
        %v1839 = vsel %vm1724, %v1838, %v1834
        %v1840 = vlaneseq
        %v1841 = vshrl.u32 %v1840, 7
        %v1842 = vsub.s32 %v1700, %v1841
        %v1843 = vrot.slane %v1657, %v1842
        %v1844 = vlaneseq
        %v1845 = vshrl.u32 %v1844, 7
        %v1846 = vsub.s32 %v1705, %v1845
        %v1847 = vrot.slane %v1660, %v1846
        %v1848 = vsel %vm1710, %v1847, %v1843
        %v1849 = vlaneseq
        %v1850 = vshrl.u32 %v1849, 7
        %v1851 = vsub.s32 %v1712, %v1850
        %v1852 = vrot.slane %v1663, %v1851
        %v1853 = vsel %vm1717, %v1852, %v1848
        %v1854 = vlaneseq
        %v1855 = vshrl.u32 %v1854, 7
        %v1856 = vsub.s32 %v1719, %v1855
        %v1857 = vrot.slane %v1666, %v1856
        %v1858 = vsel %vm1724, %v1857, %v1853
        %v1859 = vsel %vm1161, %v1744, %v1725
        %v1860 = vsel %vm1163, %v1763, %v1859
        %v1861 = vsel %vm1165, %v1782, %v1860
        %v1862 = vsel %vm1167, %v1801, %v1861
        %v1863 = vsel %vm1169, %v1820, %v1862
        %v1864 = vsel %vm1171, %v1839, %v1863
        %v1865 = vsel %vm1173, %v1858, %v1864
        %1875 = vset.pattern.permute.xlu0 0
        %1876 = vperm.xlu0 %1875, %v1080
        %v1877 = vpop.permute.xlu0 %1876
        %1878 = vset.pattern.permute.xlu0 0
        %1879 = vperm.xlu0 %1878, %v1081
        %v1880 = vpop.permute.xlu0 %1879
        %1881 = vset.pattern.permute.xlu0 0
        %1882 = vperm.xlu0 %1881, %v1082
        %v1883 = vpop.permute.xlu0 %1882
        %1884 = vset.pattern.permute.xlu0 0
        %1885 = vperm.xlu0 %1884, %v1083
        %v1886 = vpop.permute.xlu0 %1885
        %1887 = vset.pattern.permute.xlu0 0
        %1888 = vperm.xlu0 %1887, %v1084
        %v1889 = vpop.permute.xlu0 %1888
        %1890 = vset.pattern.permute.xlu0 0
        %1891 = vperm.xlu0 %1890, %v1085
        %v1892 = vpop.permute.xlu0 %1891
        %1893 = vset.pattern.permute.xlu0 0
        %1894 = vperm.xlu0 %1893, %v1086
        %v1895 = vpop.permute.xlu0 %1894
        %1896 = vset.pattern.permute.xlu0 0
        %1897 = vperm.xlu0 %1896, %v1087
        %v1898 = vpop.permute.xlu0 %1897
        %v1899 = vadd.s32 %v1700, 4294967264
        %v1900 = vlaneseq
        %v1901 = vshrl.u32 %v1900, 7
        %v1902 = vsub.s32 %v1899, %v1901
        %v1903 = vrot.slane %v1877, %v1902
        %v1904 = vlaneseq
        %v1905 = vshrl.u32 %v1904, 7
        %v1906 = vsub.s32 %v1899, %v1905
        %v1907 = vrot.slane %v1880, %v1906
        %v1908 = vlaneseq
        %v1909 = vshrl.u32 %v1908, 7
        %v1910 = vsub.s32 %v1899, %v1909
        %v1911 = vrot.slane %v1883, %v1910
        %v1912 = vlaneseq
        %v1913 = vshrl.u32 %v1912, 7
        %v1914 = vsub.s32 %v1899, %v1913
        %v1915 = vrot.slane %v1886, %v1914
        %v1916 = vlaneseq
        %v1917 = vshrl.u32 %v1916, 7
        %v1918 = vsub.s32 %v1899, %v1917
        %v1919 = vrot.slane %v1889, %v1918
        %v1920 = vlaneseq
        %v1921 = vshrl.u32 %v1920, 7
        %v1922 = vsub.s32 %v1899, %v1921
        %v1923 = vrot.slane %v1892, %v1922
        %v1924 = vlaneseq
        %v1925 = vshrl.u32 %v1924, 7
        %v1926 = vsub.s32 %v1899, %v1925
        %v1927 = vrot.slane %v1895, %v1926
        %v1928 = vlaneseq
        %v1929 = vshrl.u32 %v1928, 7
        %v1930 = vsub.s32 %v1899, %v1929
        %v1931 = vrot.slane %v1898, %v1930
        %v1932 = vsel %vm1161, %v1907, %v1903
        %v1933 = vsel %vm1163, %v1911, %v1932
        %v1934 = vsel %vm1165, %v1915, %v1933
        %v1935 = vsel %vm1167, %v1919, %v1934
        %v1936 = vsel %vm1169, %v1923, %v1935
        %v1937 = vsel %vm1171, %v1927, %v1936
        %v1938 = vsel %vm1173, %v1931, %v1937
        %v1940 = vsel %vm318, %v1865, %v1938
        %v1941 = vpack.c.bf16 %v1940, %v1940
        %v1942 = vld [vmem:[%s4] sm:$0xf]
        %v1943 = vld [vmem:[%s4 + $0x4] sm:$0xf]
        %v1944 = vld [vmem:[%s4 + $0x8] sm:$0xf]
        %v1945 = vld [vmem:[%s4 + $0xc] sm:$0xf]
        %v1946 = vld [vmem:[%s4 + $0x10] sm:$0x3]
        %v1947 = vld [vmem:[%s5] sm:$0x1]
        %v1949 = vlaneseq
        %v1950 = vshrl.u32 %v1949, 7
        %v1951 = vsub.s32 0, %v1950
        %v1952 = vrot.slane %v1947, %v1951
        %v1959 = vunpack.c.l.b16 %v1942
        %v1960 = vunpack.c.l.b16 %v1943
        %v1961 = vunpack.c.l.b16 %v1944
        %v1962 = vunpack.c.l.b16 %v1945
        %v1963 = vunpack.c.l.b16 %v1946
        %v1964 = vpack.c.b16 %v1960, %v1959
        %v1965 = vpack.c.b16 %v1962, %v1961
        %v1966 = vpack.c.b16 %v1963, %v1963
        %vm1969 = vcmask 293888
        %v1971 = vsel %vm1969, %v1941, 0
        %vm1973 = vcmask 1041408
        %v1975 = vsel %vm1973, %v1966, 0
        %1977 = vmatprep.subr.bf16.mxu0 0
        %1978 = vmatpush1.bf16.msra.mxu0 0
        %1979 = vmatprep.subr.bf16.mxu0 0
        %1980 = vmatpush1.bf16.msra.mxu0 0
        %1981 = vmatprep.subr.bf16.mxu0 0
        %1982 = vmatpush1.bf16.msra.mxu0 0
        %1983 = vmatprep.subr.bf16.mxu0 0
        %1984 = vmatpush1.bf16.msra.mxu0 0
        %1985 = vmatprep.subr.bf16.mxu0 0
        %1986 = vmatpush1.bf16.msra.mxu0 0
        %1987 = vmatprep.subr.bf16.mxu0 0
        %1988 = vmatpush1.bf16.msra.mxu0 %v1975
        %1989 = vmatprep.subr.bf16.mxu0 0
        %1990 = vmatpush1.bf16.msra.mxu0 %v1965
        %1991 = vmatprep.subr.bf16.mxu0 0
        %1992 = vmatpush1.bf16.msra.mxu0 %v1964
        %1993 = vmatprep.subr.bf16.mxu0 0
        %1994 = vmatpush2.bf16.msra.mxu0 0
        %1995 = vmatprep.subr.bf16.mxu0 0
        %1996 = vmatpush2.bf16.msra.mxu0 0
        %1997 = vmatprep.subr.bf16.mxu0 0
        %1998 = vmatpush2.bf16.msra.mxu0 0
        %1999 = vmatprep.subr.bf16.mxu0 0
        %2000 = vmatpush2.bf16.msra.mxu0 0
        %2001 = vmatprep.subr.bf16.mxu0 0
        %2002 = vmatpush2.bf16.msra.mxu0 0
        %2003 = vmatprep.subr.bf16.mxu0 0
        %2004 = vmatpush2.bf16.msra.mxu0 0
        %2005 = vmatprep.subr.bf16.mxu0 0
        %2006 = vmatpush2.bf16.msra.mxu0 0
        %2007 = vmatprep.subr.bf16.mxu0 0
        %2008 = vmatpush2.bf16.msra.mxu0 0
        %2009 = vmatprep.mubr.bf16.mxu0 0
        %2010 = vmatmul.mubr.bf16.gmra.mxu0 %v1971
        %v2011 = vpop.f32.mrf.mxu0
        %v2012 = vadd.f32 %v1952, %v2011
        %v2013 = vpop.f32.mrf.mxu0
        %v2014 = vpop.f32.mrf.mxu0
        %v2015 = vpop.f32.mrf.mxu0
        %2016 = vdwg.mxu0
        %2017 = vst [vmem:[%s275] sm:$0xff] %v2012
        %s2018 = sand.u32 %s161, 1
        %s2019 = scalar_lea.sflag [#allocation3], %s2018
        %s2020 = sand.u32 %s161, 1
        %s2021 = smul.addr %s2020, 8
        %s2022 = scalar_lea.vmem [#allocation2], %s2021
        %p2023 = scmp.lt.s32.totalorder %s22, 3
        %s2024 = scalar_select %p2023, %s22, 3
        %s2025 = smul.addr %s2024, 8
        %s2026 = scalar_lea.vmem %s7, %s2025
        // Predicated region
        $region45: #{_lambda_.1} parent=43 // pred_check
          %p2027 = pneg %p171
        $region46: #{_lambda_.1} parent=43 // pred_check_branch
          %2029 = sbr.rel (%p2027) target = $region48
        $region47: #{_lambda_.1} parent=43 // pred_region
          %s2031 = ssub.s32 128, 128
          %2032 = vsyncadd %s2019, %s2031
          %s2033 = smul.addr %s22, 128
          %s2034 = scalar_lea.hbm %s6, %s2033
          %s2036 = sshll.u32 %s2022, 4
          %s2037 = int_to_ptr.vmem [resolvable:$true] %s2036
          %2039 = dma.vmem_to_hbm [thread:$0]  %s2037, 128, %s2034, %s2019
        $region48: #{_lambda_.1} parent=43 // pred_fallthru
          _
        // Predicated region
        $region49: #{_lambda_.1} parent=43 // pred_check
          %p2040 = pneg %p197
        $region50: #{_lambda_.1} parent=43 // pred_check_branch
          %2042 = sbr.rel (%p2040) target = $region52
        $region51: #{_lambda_.1} parent=43 // pred_region
          _
        $region52: #{_lambda_.1} parent=43 // pred_fallthru
          _
      $region44: #{_lambda_.1} parent=5 // pred_fallthru
        _
      %p2043 = scmp.le.s32.totalorder 2, %s17
      // Predicated region
      $region53: #{_lambda_.1} parent=5 // pred_check
        %p2044 = pneg %p2043
      $region54: #{_lambda_.1} parent=5 // pred_check_branch
        %2046 = sbr.rel (%p2044) target = $region56
      $region55: #{_lambda_.1} parent=5 // pred_region
        %s2047 = ssub.s32 %s17, 2
        // Predicated region
        $region57: #{_lambda_.1} parent=55 // pred_check
          %p2048 = pneg %p177
        $region58: #{_lambda_.1} parent=55 // pred_check_branch
          %2050 = sbr.rel (%p2048) target = $region60
        $region59: #{_lambda_.1} parent=55 // pred_region
          %s2051 = sand.u32 %s162, 1
          %s2052 = scalar_lea.sflag [#allocation3], %s2051
          %s2053 = sand.u32 %s162, 1
          %s2054 = smul.addr %s2053, 8
          %s2055 = scalar_lea.vmem [#allocation2], %s2054
          %2056 = dma.done %s2052, 128
        $region60: #{_lambda_.1} parent=55 // pred_fallthru
          _
        // Predicated region
        $region61: #{_lambda_.1} parent=55 // pred_check
          %p2057 = pneg %p203
        $region62: #{_lambda_.1} parent=55 // pred_check_branch
          %2059 = sbr.rel (%p2057) target = $region64
        $region63: #{_lambda_.1} parent=55 // pred_region
          %p2060 = scmp.lt.s32.totalorder %s23, 3
          %s2061 = scalar_select %p2060, %s23, 3
          %s2062 = smul.addr %s2061, 8
          %s2063 = scalar_lea.vmem %s7, %s2062
        $region64: #{_lambda_.1} parent=55 // pred_fallthru
          _
      $region56: #{_lambda_.1} parent=5 // pred_fallthru
        _
    $region6: #{_lambda_.1} parent=1 // loop_footer
      %s21 = sadd.s32 1, %s17
    $region7: #{_lambda_.1} parent=1 // loop_footer_branch
      %16 = sbr.rel target = $region3
    $region8: #{_lambda_.1} parent=1 // loop_exit
      _
    %2064 = vsyncpa [#allocation3], 1
    %s2065 = scalar_lea.sflag [#allocation3], 1
    %2066 = vsyncpa %s2065, 1

</llo_original>
